<compile_context>
chip_gen: v6e
topology: v6e:2x2x1
jax: 0.10.0
libtpu: 0.0.40
codegen_flags: <defaults>
</compile_context>

<pallas_src>
import functools
import math

import jax
import jax.numpy as jnp
from jax.experimental import pallas as pl
from jax.experimental.pallas import tpu as pltpu


COMPUTE_DTYPE = jnp.bfloat16          # MXU operand dtype (accumulation is f32)
_VMEM_LIMIT = 52 * 1024 * 1024        # safe on v7x (64 MiB) and v5e/v6e (128 MiB)


# ----------------------------- tile selection ------------------------------


def _pick_tile_m(m, pref=512):
    """Sublane-dim tile: multiple of 8 that divides m when possible."""
    if m % 8 == 0:
        for t in range(min(pref, m), 0, -8):
            if m % t == 0:
                return t
    if m <= pref:
        return m            # full dim (always legal)
    return 256              # ragged last block (masked by Pallas)


def _pick_tile_n(n, pref=256):
    """Lane-dim tile: multiple of 128 (MXU/lane friendly) or the full dim."""
    if n % 128 == 0:
        for t in range(min(pref, n), 0, -128):
            if n % t == 0:
                return t
        return 128
    if n <= pref:
        return n            # full dim (always legal)
    return 256              # ragged last block (masked by Pallas)


# ------------------------ fused LN + matmul + epilogue ----------------------


def _fused_matmul_kernel(*refs, has_ln, has_bias, n_res, activation, eps,
                         compute_dtype, needs_prologue):
    it = iter(refs)
    x_ref = next(it)
    g_ref = next(it) if has_ln else None
    beta_ref = next(it) if has_ln else None
    w_ref = next(it)
    bias_ref = next(it) if has_bias else None
    res_refs = [next(it) for _ in range(n_res)]
    o_ref = next(it)
    xc_ref = next(it) if needs_prologue else None

    if needs_prologue:
        # LN + bf16 cast done ONCE per row block (j == 0), reused for all j.
        @pl.when(pl.program_id(1) == 0)
        def _():
            x = x_ref[...].astype(jnp.float32)
            if has_ln:
                mean = jnp.mean(x, axis=-1, keepdims=True)
                var = jnp.mean(jnp.square(x - mean), axis=-1, keepdims=True)
                x = (x - mean) * jax.lax.rsqrt(var + eps)
                x = x * g_ref[...] + beta_ref[...]
            xc_ref[...] = x.astype(compute_dtype)
        x_mm = xc_ref[...]
    else:
        x_mm = x_ref[...].astype(compute_dtype)

    acc = jnp.dot(x_mm, w_ref[...].astype(compute_dtype),
                  preferred_element_type=jnp.float32)            # (tm, tn) f32
    if has_bias:
        acc = acc + bias_ref[...].astype(jnp.float32)
    if activation == "gelu":                                     # exact erf GELU
        acc = 0.5 * acc * (1.0 + jax.lax.erf(acc * jnp.float32(1.0 / math.sqrt(2.0))))
    for r in res_refs:
        acc = acc + r[...].astype(jnp.float32)
    o_ref[...] = acc.astype(o_ref.dtype)


def fused_matmul(x, w, *, bias=None, ln=None, residuals=(), activation=None,
                 eps=1e-5, compute_dtype=COMPUTE_DTYPE, out_dtype=jnp.float32):
    """y = activation(LN(x) @ w + bias) + sum(residuals); each piece optional."""
    m, k = x.shape
    k2, n = w.shape
    assert k == k2
    tm = _pick_tile_m(m)
    tn = _pick_tile_n(n)
    grid = (pl.cdiv(m, tm), pl.cdiv(n, tn))

    has_ln = ln is not None
    has_bias = bias is not None
    residuals = tuple(residuals)
    n_res = len(residuals)
    needs_prologue = has_ln or (x.dtype != jnp.dtype(compute_dtype))

    in_specs = [pl.BlockSpec((tm, k), lambda i, j: (i, 0))]
    args = [x]
    if has_ln:
        g, b_ln = ln
        in_specs += [pl.BlockSpec((1, k), lambda i, j: (0, 0)),
                     pl.BlockSpec((1, k), lambda i, j: (0, 0))]
        args += [g.reshape(1, k).astype(jnp.float32),
                 b_ln.reshape(1, k).astype(jnp.float32)]
    in_specs.append(pl.BlockSpec((k, tn), lambda i, j: (0, j)))
    args.append(w)
    if has_bias:
        in_specs.append(pl.BlockSpec((1, tn), lambda i, j: (0, j)))
        args.append(bias.reshape(1, n).astype(jnp.float32))
    for r in residuals:
        in_specs.append(pl.BlockSpec((tm, tn), lambda i, j: (i, j)))
        args.append(r)

    kernel = functools.partial(
        _fused_matmul_kernel, has_ln=has_ln, has_bias=has_bias, n_res=n_res,
        activation=activation, eps=eps, compute_dtype=compute_dtype,
        needs_prologue=needs_prologue)

    bytes_accessed = (int(x.size) * x.dtype.itemsize
                      + int(w.size) * w.dtype.itemsize
                      + (n * 4 if has_bias else 0)
                      + sum(int(r.size) * r.dtype.itemsize for r in residuals)
                      + m * n * jnp.dtype(out_dtype).itemsize)
    cost = pl.CostEstimate(
        flops=2 * m * n * k,
        transcendentals=(m * n if activation == "gelu" else 0),
        bytes_accessed=int(bytes_accessed))

    scratch = [pltpu.VMEM((tm, k), compute_dtype)] if needs_prologue else []
    j_sem = "arbitrary" if needs_prologue else "parallel"

    return pl.pallas_call(
        kernel,
        out_shape=jax.ShapeDtypeStruct((m, n), out_dtype),
        grid=grid,
        in_specs=in_specs,
        out_specs=pl.BlockSpec((tm, tn), lambda i, j: (i, j)),
        scratch_shapes=scratch,
        compiler_params=pltpu.CompilerParams(
            dimension_semantics=("parallel", j_sem),
            vmem_limit_bytes=_VMEM_LIMIT),
        cost_estimate=cost,
    )(*args)


# ----------------- embedding LayerNorm + positional embedding ---------------


def _embed_ln_kernel(tok_ref, g_ref, b_ref, pos_ref, o_ref, *, eps):
    x = tok_ref[0].astype(jnp.float32)                       # (tt, D)
    mean = jnp.mean(x, axis=-1, keepdims=True)
    var = jnp.mean(jnp.square(x - mean), axis=-1, keepdims=True)
    y = (x - mean) * jax.lax.rsqrt(var + eps)
    y = y * g_ref[...] + b_ref[...] + pos_ref[...].astype(jnp.float32)
    o_ref[0] = y.astype(o_ref.dtype)


def embed_layernorm_add_pos(tok, gamma, beta, pos, eps=1e-5):
    B, T, D = tok.shape
    tt = _pick_tile_m(T)
    grid = (B, pl.cdiv(T, tt))
    return pl.pallas_call(
        functools.partial(_embed_ln_kernel, eps=eps),
        out_shape=jax.ShapeDtypeStruct((B, T, D), jnp.float32),
        grid=grid,
        in_specs=[
            pl.BlockSpec((1, tt, D), lambda b, t: (b, t, 0)),
            pl.BlockSpec((1, D), lambda b, t: (0, 0)),
            pl.BlockSpec((1, D), lambda b, t: (0, 0)),
            pl.BlockSpec((tt, D), lambda b, t: (t, 0)),
        ],
        out_specs=pl.BlockSpec((1, tt, D), lambda b, t: (b, t, 0)),
        compiler_params=pltpu.CompilerParams(
            dimension_semantics=("parallel", "parallel"),
            vmem_limit_bytes=_VMEM_LIMIT),
    )(tok, gamma.reshape(1, D), beta.reshape(1, D), pos)


# -------------------------------- attention ---------------------------------


def _attn_kernel(qkv_ref, o_ref, *, hg, dh, d_model, n_grp, scale, compute_dtype):
    # qkv_ref: (T, 3*D) for one batch element (bf16); o_ref: (T, hg*dh).
    t = qkv_ref.shape[0]
    grp_w = hg * dh
    if n_grp > 1:
        g = pl.program_id(1)
        q0 = pl.multiple_of(g * grp_w, 128)                  # grp_w % 128 == 0 here
        k0 = pl.multiple_of(d_model + g * grp_w, 128)
        v0 = pl.multiple_of(2 * d_model + g * grp_w, 128)
    else:
        q0, k0, v0 = 0, d_model, 2 * d_model

    # Load the head-group slabs once (scale q in f32, O(T*dh) work).
    q_grp = (qkv_ref[:, pl.ds(q0, grp_w)].astype(jnp.float32)
             * jnp.float32(scale)).astype(compute_dtype)     # (T, grp_w)
    k_grp = qkv_ref[:, pl.ds(k0, grp_w)].astype(compute_dtype)
    v_grp = qkv_ref[:, pl.ds(v0, grp_w)].astype(compute_dtype)

    # Single 2-D causal mask, shared by all heads of the group.
    row = jax.lax.broadcasted_iota(jnp.int32, (t, t), 0)
    col = jax.lax.broadcasted_iota(jnp.int32, (t, t), 1)
    causal = col <= row

    for h in range(hg):
        sl = slice(h * dh, (h + 1) * dh)
        q = q_grp[:, sl]                                     # (T, dh)
        k = k_grp[:, sl]
        v = v_grp[:, sl]
        s = jax.lax.dot_general(q, k, (((1,), (1,)), ((), ())),
                                preferred_element_type=jnp.float32)   # (T, T)
        s = jnp.where(causal, s, jnp.float32(-1e30))
        m = jnp.max(s, axis=-1, keepdims=True)
        p = jnp.exp(s - m)
        l = jnp.sum(p, axis=-1, keepdims=True)
        o = jax.lax.dot_general(p.astype(compute_dtype), v,
                                (((1,), (0,)), ((), ())),
                                preferred_element_type=jnp.float32)   # (T, dh)
        o_ref[:, sl] = (o * pl.reciprocal(l, approx=False)).astype(o_ref.dtype)


def causal_attention(qkv, B, T, n_head, dh, compute_dtype):
    """qkv: (B*T, 3*D) packed [Q|K|V]; returns (B*T, D) attention output."""
    M, three_d = qkv.shape
    D = n_head * dh
    assert three_d == 3 * D and M == B * T

    # Smallest head group whose lane width is a multiple of 128 (lane-dense
    # output blocks + more grid points); fall back to all heads (full-D block).
    hg = n_head
    for cand in range(1, n_head + 1):
        if n_head % cand == 0 and (cand * dh) % 128 == 0:
            hg = cand
            break
    n_grp = n_head // hg
    grp_w = hg * dh
    scale = 1.0 / math.sqrt(dh)

    kernel = functools.partial(
        _attn_kernel, hg=hg, dh=dh, d_model=D, n_grp=n_grp, scale=scale,
        compute_dtype=compute_dtype)

    return pl.pallas_call(
        kernel,
        out_shape=jax.ShapeDtypeStruct((M, D), compute_dtype),
        grid=(B, n_grp),
        # qkv block is constant over the group axis -> fetched once per batch.
        in_specs=[pl.BlockSpec((T, 3 * D), lambda b, g: (b, 0))],
        out_specs=pl.BlockSpec((T, grp_w), lambda b, g: (b, g)),
        compiler_params=pltpu.CompilerParams(
            dimension_semantics=("parallel", "parallel"),
            vmem_limit_bytes=_VMEM_LIMIT),
    )(qkv)


# ------------------------------ model wrapper --------------------------------


def transformer_block(x0, blk, B, T, n_head, compute_dtype):
    M, D = x0.shape
    dh = D // n_head

    # fused LayerNorm1 + QKV projection (single matmul over [Wq|Wk|Wv]), bf16 out
    qkv = fused_matmul(x0, blk["w_qkv"], bias=blk["b_qkv"],
                       ln=(blk["ln1_g"], blk["ln1_b"]),
                       compute_dtype=compute_dtype,
                       out_dtype=compute_dtype)                   # (M, 3D) bf16

    # causal attention straight on the packed (M, 3D) layout -> (M, D) bf16
    o = causal_attention(qkv, B, T, n_head, dh, compute_dtype)

    # attention output projection + bias + residual:  x1 = x0 + attn(norm1(x0))
    x1 = fused_matmul(o, blk["wo"], bias=blk["bo"], residuals=(x0,),
                      compute_dtype=compute_dtype)                # f32

    # fused LayerNorm2 + MLP fc + exact GELU, bf16 hidden
    h = fused_matmul(x1, blk["w_fc"], bias=blk["b_fc"],
                     ln=(blk["ln2_g"], blk["ln2_b"]), activation="gelu",
                     compute_dtype=compute_dtype,
                     out_dtype=compute_dtype)                     # (M, 4D) bf16

    # MLP proj + bias + both residuals.  Block output = x1 + mlp_out and the
    # outer residual (x = x + block(x)) adds x0 again -> x_new = x0 + x1 + mlp_out.
    x_new = fused_matmul(h, blk["w_proj"], bias=blk["b_proj"],
                         residuals=(x1, x0), compute_dtype=compute_dtype)
    return x_new


def transformer_forward(idx, params, n_head, compute_dtype=COMPUTE_DTYPE):
    B, T = idx.shape
    D = params["tok_emb"].shape[1]

    # token-embedding row gather stays in XLA (no clean dense-Pallas equivalent)
    tok = jnp.take(params["tok_emb"], idx, axis=0)                # (B, T, D)
    pos = params["pos_emb"][0, :T, :]                             # (T, D)
    x = embed_layernorm_add_pos(tok, params["ln0_g"], params["ln0_b"], pos)
    x2 = x.reshape(B * T, D)
    # dropout -> identity (eval)

    for blk in params["blocks"]:
        x2 = transformer_block(x2, blk, B, T, n_head, compute_dtype)

    # fused LayerNorm_f + head projection (no bias -> no synthetic zero bias)
    logits = fused_matmul(x2, params["head_w"],
                          ln=(params["lnf_g"], params["lnf_b"]),
                          compute_dtype=compute_dtype)
    return logits.reshape(B, T, -1)


# ------------------------------ parameter init -------------------------------


def init_params(key, vocab_size, n_embd, n_head, n_layer,
                matmul_weight_dtype=COMPUTE_DTYPE):
    std = 0.01
    keys = jax.random.split(key, 2 + 4 * n_layer)
    ki = iter(keys)

    def nrm(shape, dtype=jnp.float32):
        w = std * jax.random.normal(next(ki), shape, dtype=jnp.float32)
        return w.astype(dtype)

    params = {
        "tok_emb": nrm((vocab_size, n_embd)),
        "pos_emb": jnp.zeros((1, 1024, n_embd), jnp.float32),   # torch.zeros init
        "ln0_g": jnp.ones((n_embd,), jnp.float32),
        "ln0_b": jnp.zeros((n_embd,), jnp.float32),
        "lnf_g": jnp.ones((n_embd,), jnp.float32),
        "lnf_b": jnp.zeros((n_embd,), jnp.float32),
        "head_w": nrm((n_embd, vocab_size), matmul_weight_dtype),
        "blocks": [],
    }
    for _ in range(n_layer):
        blk = {
            "ln1_g": jnp.ones((n_embd,), jnp.float32),
            "ln1_b": jnp.zeros((n_embd,), jnp.float32),
            "ln2_g": jnp.ones((n_embd,), jnp.float32),
            "ln2_b": jnp.zeros((n_embd,), jnp.float32),
            "w_qkv": nrm((n_embd, 3 * n_embd), matmul_weight_dtype),  # [Wq|Wk|Wv]
            "b_qkv": jnp.zeros((3 * n_embd,), jnp.float32),
            "wo": nrm((n_embd, n_embd), matmul_weight_dtype),
            "bo": jnp.zeros((n_embd,), jnp.float32),
            "w_fc": nrm((n_embd, 4 * n_embd), matmul_weight_dtype),
            "b_fc": jnp.zeros((4 * n_embd,), jnp.float32),
            "w_proj": nrm((4 * n_embd, n_embd), matmul_weight_dtype),
            "b_proj": jnp.zeros((n_embd,), jnp.float32),
        }
        params["blocks"].append(blk)
    return params


# --------------------------- pure-JAX reference ------------------------------


def reference_forward(idx, params, n_head):
    """f32 XLA reference mirroring the torch forward (same bf16-stored weights)."""
    def ln(x, g, b, eps=1e-5):
        mu = jnp.mean(x, axis=-1, keepdims=True)
        var = jnp.mean(jnp.square(x - mu), axis=-1, keepdims=True)
        return (x - mu) * jax.lax.rsqrt(var + eps) * g + b

    B, T = idx.shape
    D = params["tok_emb"].shape[1]
    dh = D // n_head
    x = jnp.take(params["tok_emb"], idx, axis=0)
    x = ln(x, params["ln0_g"], params["ln0_b"])
    x = x + params["pos_emb"][0, :T]
    mask = jnp.tril(jnp.ones((T, T), bool))
    for blk in params["blocks"]:
        h1 = ln(x, blk["ln1_g"], blk["ln1_b"])
        qkv = h1 @ blk["w_qkv"].astype(jnp.float32) + blk["b_qkv"]
        q, k, v = jnp.split(qkv, 3, axis=-1)
        def heads(z):
            return z.reshape(B, T, n_head, dh).transpose(0, 2, 1, 3)
        q, k, v = heads(q), heads(k), heads(v)
        s = (q @ k.transpose(0, 1, 3, 2)) / math.sqrt(dh)
        s = jnp.where(mask, s, -jnp.inf)
        p = jax.nn.softmax(s, axis=-1)
        o = (p @ v).transpose(0, 2, 1, 3).reshape(B, T, D)
        attn = o @ blk["wo"].astype(jnp.float32) + blk["bo"]
        x1 = x + attn
        h2 = ln(x1, blk["ln2_g"], blk["ln2_b"])
        mlp = jax.nn.gelu(h2 @ blk["w_fc"].astype(jnp.float32) + blk["b_fc"],
                          approximate=False)
        mlp = mlp @ blk["w_proj"].astype(jnp.float32) + blk["b_proj"]
        x = x + x1 + mlp                      # outer residual + block residuals
    x = ln(x, params["lnf_g"], params["lnf_b"])
    return x @ params["head_w"].astype(jnp.float32)


# TODO(synk): GPT2Tokenizer / pad-token handling, the cross-entropy loss
# (targets path) and generate() sampling are host-side logic with no Pallas
# hot path; only the logits forward pass is implemented here.


if __name__ == "__main__":
    # small, forward-consistent shapes
    B, T = 2, 8
    vocab_size, n_embd, n_head, n_layer = 256, 64, 4, 2

    root = jax.random.PRNGKey(0)
    k_params, k_idx = jax.random.split(root)
    params = init_params(k_params, vocab_size, n_embd, n_head, n_layer,
                         matmul_weight_dtype=COMPUTE_DTYPE)
    idx = jax.random.randint(k_idx, (B, T), 0, vocab_size, dtype=jnp.int32)

    fwd = jax.jit(functools.partial(transformer_forward, n_head=n_head))
    logits = fwd(idx, params)
    jax.block_until_ready(logits)

    assert logits.shape == (B, T, vocab_size), logits.shape
    assert bool(jnp.all(jnp.isfinite(logits)))

    ref = reference_forward(idx, params, n_head)
    err = float(jnp.max(jnp.abs(logits - ref)))
    assert err < 5e-2, f"max abs error vs reference: {err}"
    print("KERNEL_OK")
</pallas_src>

<mosaic_0001>
module attributes {stable_mosaic.version = 11 : i64} {
  func.func @_fused_matmul_kernel(%arg0: i32, %arg1: i32, %arg2: memref<16x64xf32, #tpu.memory_space<vmem>>, %arg3: memref<1x64xf32, #tpu.memory_space<vmem>>, %arg4: memref<1x64xf32, #tpu.memory_space<vmem>>, %arg5: memref<64x192xbf16, #tpu.memory_space<vmem>>, %arg6: memref<1x192xf32, #tpu.memory_space<vmem>>, %arg7: memref<16x192xbf16, #tpu.memory_space<vmem>>, %arg8: memref<16x64xbf16, #tpu.memory_space<vmem>>) attributes {dimension_semantics = [#tpu.dimension_semantics<parallel>, #tpu.dimension_semantics<arbitrary>], iteration_bounds = array<i64: 1, 1>, scalar_prefetch = 0 : i64, scratch_operands = 1 : i64, tpu.core_type = #tpu.core_type<tc>, window_params = [{transform_indices = @transform_0, window_bounds = array<i64: 16, 64>}, {pipeline_mode = #tpu.pipeline_mode<synchronous>, transform_indices = @transform_1, window_bounds = array<i64: 1, 64>}, {pipeline_mode = #tpu.pipeline_mode<synchronous>, transform_indices = @transform_2, window_bounds = array<i64: 1, 64>}, {transform_indices = @transform_3, window_bounds = array<i64: 64, 192>}, {transform_indices = @transform_4, window_bounds = array<i64: 1, 192>}, {transform_indices = @transform_5, window_bounds = array<i64: 16, 192>}]} {
    %c0_i32 = arith.constant 0 : i32
    %0 = arith.cmpi eq, %arg1, %c0_i32 : i32
    %1 = arith.extui %0 : i1 to i32
    %c0_i32_0 = arith.constant 0 : i32
    %2 = arith.cmpi ne, %1, %c0_i32_0 : i32
    scf.if %2 {
      %c0_8 = arith.constant 0 : index
      %c0_9 = arith.constant 0 : index
      %11 = vector.load %arg2[%c0_8, %c0_9] : memref<16x64xf32, #tpu.memory_space<vmem>>, vector<16x64xf32>
      %cst_10 = arith.constant dense<0.000000e+00> : vector<16xf32>
      %12 = vector.multi_reduction <add>, %11, %cst_10 [1] : vector<16x64xf32> to vector<16xf32>
      %13 = vector.shape_cast %12 : vector<16xf32> to vector<16x1xf32>
      %cst_11 = arith.constant 6.400000e+01 : f32
      %14 = vector.broadcast %cst_11 : f32 to vector<16x1xf32>
      %15 = arith.divf %13, %14 : vector<16x1xf32>
      %16 = vector.broadcast %15 : vector<16x1xf32> to vector<16x64xf32>
      %17 = arith.subf %11, %16 : vector<16x64xf32>
      %18 = arith.mulf %17, %17 : vector<16x64xf32>
      %cst_12 = arith.constant dense<0.000000e+00> : vector<16xf32>
      %19 = vector.multi_reduction <add>, %18, %cst_12 [1] : vector<16x64xf32> to vector<16xf32>
      %20 = vector.shape_cast %19 : vector<16xf32> to vector<16x1xf32>
      %cst_13 = arith.constant 6.400000e+01 : f32
      %21 = vector.broadcast %cst_13 : f32 to vector<16x1xf32>
      %22 = arith.divf %20, %21 : vector<16x1xf32>
      %23 = vector.broadcast %15 : vector<16x1xf32> to vector<16x64xf32>
      %24 = arith.subf %11, %23 : vector<16x64xf32>
      %cst_14 = arith.constant 9.99999974E-6 : f32
      %25 = vector.broadcast %cst_14 : f32 to vector<16x1xf32>
      %26 = arith.addf %22, %25 : vector<16x1xf32>
      %27 = math.rsqrt %26 : vector<16x1xf32>
      %28 = vector.broadcast %27 : vector<16x1xf32> to vector<16x64xf32>
      %29 = arith.mulf %24, %28 : vector<16x64xf32>
      %c0_15 = arith.constant 0 : index
      %c0_16 = arith.constant 0 : index
      %30 = vector.load %arg3[%c0_15, %c0_16] : memref<1x64xf32, #tpu.memory_space<vmem>>, vector<1x64xf32>
      %31 = vector.broadcast %30 : vector<1x64xf32> to vector<16x64xf32>
      %32 = arith.mulf %29, %31 : vector<16x64xf32>
      %c0_17 = arith.constant 0 : index
      %c0_18 = arith.constant 0 : index
      %33 = vector.load %arg4[%c0_17, %c0_18] : memref<1x64xf32, #tpu.memory_space<vmem>>, vector<1x64xf32>
      %34 = vector.broadcast %33 : vector<1x64xf32> to vector<16x64xf32>
      %35 = arith.addf %32, %34 : vector<16x64xf32>
      %36 = arith.truncf %35 : vector<16x64xf32> to vector<16x64xbf16>
      %c0_19 = arith.constant 0 : index
      %c0_20 = arith.constant 0 : index
      %37 = vector.load %arg8[%c0_19, %c0_20] : memref<16x64xbf16, #tpu.memory_space<vmem>>, vector<16x64xbf16>
      tpu.vector_store %arg8[%c0_19, %c0_20], %36 {strides = array<i32>} : memref<16x64xbf16, #tpu.memory_space<vmem>>, vector<16x64xbf16>,
    } else {
    }
    %c0 = arith.constant 0 : index
    %c0_1 = arith.constant 0 : index
    %3 = vector.load %arg8[%c0, %c0_1] : memref<16x64xbf16, #tpu.memory_space<vmem>>, vector<16x64xbf16>
    %c0_2 = arith.constant 0 : index
    %c0_3 = arith.constant 0 : index
    %4 = vector.load %arg5[%c0_2, %c0_3] : memref<64x192xbf16, #tpu.memory_space<vmem>>, vector<64x192xbf16>
    %cst = arith.constant dense<0.000000e+00> : vector<16x192xf32>
    %5 = tpu.matmul %3, %4, %cst {dimension_numbers = #tpu.dot_dimension_numbers<[1], [0], [0], [1], [0, 0, 1, 1], [], []>} : vector<16x64xbf16>, vector<64x192xbf16>, vector<16x192xf32> -> vector<16x192xf32>
    %c0_4 = arith.constant 0 : index
    %c0_5 = arith.constant 0 : index
    %6 = vector.load %arg6[%c0_4, %c0_5] : memref<1x192xf32, #tpu.memory_space<vmem>>, vector<1x192xf32>
    %7 = vector.broadcast %6 : vector<1x192xf32> to vector<16x192xf32>
    %8 = arith.addf %5, %7 : vector<16x192xf32>
    %9 = arith.truncf %8 : vector<16x192xf32> to vector<16x192xbf16>
    %c0_6 = arith.constant 0 : index
    %c0_7 = arith.constant 0 : index
    %10 = vector.load %arg7[%c0_6, %c0_7] : memref<16x192xbf16, #tpu.memory_space<vmem>>, vector<16x192xbf16>
    tpu.vector_store %arg7[%c0_6, %c0_7], %9 {strides = array<i32>} : memref<16x192xbf16, #tpu.memory_space<vmem>>, vector<16x192xbf16>,
    return
  }
  func.func @transform_0(%arg0: i32, %arg1: i32) -> (i32, i32) {
    %c0_i32 = arith.constant 0 : i32
    %c0_i32_0 = arith.constant 0 : i32
    return %arg0, %c0_i32 : i32, i32
  }
  func.func @transform_1(%arg0: i32, %arg1: i32) -> (i32, i32) {
    %c0_i32 = arith.constant 0 : i32
    %c0_i32_0 = arith.constant 0 : i32
    %c0_i32_1 = arith.constant 0 : i32
    return %c0_i32, %c0_i32_0 : i32, i32
  }
  func.func @transform_2(%arg0: i32, %arg1: i32) -> (i32, i32) {
    %c0_i32 = arith.constant 0 : i32
    %c0_i32_0 = arith.constant 0 : i32
    %c0_i32_1 = arith.constant 0 : i32
    return %c0_i32, %c0_i32_0 : i32, i32
  }
  func.func @transform_3(%arg0: i32, %arg1: i32) -> (i32, i32) {
    %c0_i32 = arith.constant 0 : i32
    %c0_i32_0 = arith.constant 0 : i32
    return %c0_i32, %arg1 : i32, i32
  }
  func.func @transform_4(%arg0: i32, %arg1: i32) -> (i32, i32) {
    %c0_i32 = arith.constant 0 : i32
    %c0_i32_0 = arith.constant 0 : i32
    return %c0_i32, %arg1 : i32, i32
  }
  func.func @transform_5(%arg0: i32, %arg1: i32) -> (i32, i32) {
    %c0_i32 = arith.constant 0 : i32
    return %arg0, %arg1 : i32, i32
  }
}

module attributes {stable_mosaic.version = 11 : i64} {
  func.func @_fused_matmul_kernel(%arg0: i32, %arg1: i32, %arg2: memref<16x64xbf16, #tpu.memory_space<vmem>>, %arg3: memref<64x64xbf16, #tpu.memory_space<vmem>>, %arg4: memref<1x64xf32, #tpu.memory_space<vmem>>, %arg5: memref<16x64xf32, #tpu.memory_space<vmem>>, %arg6: memref<16x64xf32, #tpu.memory_space<vmem>>) attributes {dimension_semantics = [#tpu.dimension_semantics<parallel>, #tpu.dimension_semantics<parallel>], iteration_bounds = array<i64: 1, 1>, scalar_prefetch = 0 : i64, scratch_operands = 0 : i64, tpu.core_type = #tpu.core_type<tc>, window_params = [{transform_indices = @transform_0, window_bounds = array<i64: 16, 64>}, {transform_indices = @transform_1, window_bounds = array<i64: 64, 64>}, {transform_indices = @transform_2, window_bounds = array<i64: 1, 64>}, {transform_indices = @transform_3, window_bounds = array<i64: 16, 64>}, {transform_indices = @transform_4, window_bounds = array<i64: 16, 64>}]} {
    %c0 = arith.constant 0 : index
    %c0_0 = arith.constant 0 : index
    %0 = vector.load %arg2[%c0, %c0_0] : memref<16x64xbf16, #tpu.memory_space<vmem>>, vector<16x64xbf16>
    %c0_1 = arith.constant 0 : index
    %c0_2 = arith.constant 0 : index
    %1 = vector.load %arg3[%c0_1, %c0_2] : memref<64x64xbf16, #tpu.memory_space<vmem>>, vector<64x64xbf16>
    %cst = arith.constant dense<0.000000e+00> : vector<16x64xf32>
    %2 = tpu.matmul %0, %1, %cst {dimension_numbers = #tpu.dot_dimension_numbers<[1], [0], [0], [1], [0, 0, 1, 1], [], []>} : vector<16x64xbf16>, vector<64x64xbf16>, vector<16x64xf32> -> vector<16x64xf32>
    %c0_3 = arith.constant 0 : index
    %c0_4 = arith.constant 0 : index
    %3 = vector.load %arg4[%c0_3, %c0_4] : memref<1x64xf32, #tpu.memory_space<vmem>>, vector<1x64xf32>
    %4 = vector.broadcast %3 : vector<1x64xf32> to vector<16x64xf32>
    %5 = arith.addf %2, %4 : vector<16x64xf32>
    %c0_5 = arith.constant 0 : index
    %c0_6 = arith.constant 0 : index
    %6 = vector.load %arg5[%c0_5, %c0_6] : memref<16x64xf32, #tpu.memory_space<vmem>>, vector<16x64xf32>
    %7 = arith.addf %5, %6 : vector<16x64xf32>
    %c0_7 = arith.constant 0 : index
    %c0_8 = arith.constant 0 : index
    %8 = vector.load %arg6[%c0_7, %c0_8] : memref<16x64xf32, #tpu.memory_space<vmem>>, vector<16x64xf32>
    tpu.vector_store %arg6[%c0_7, %c0_8], %7 {strides = array<i32>} : memref<16x64xf32, #tpu.memory_space<vmem>>, vector<16x64xf32>,
    return
  }
  func.func @transform_0(%arg0: i32, %arg1: i32) -> (i32, i32) {
    %c0_i32 = arith.constant 0 : i32
    %c0_i32_0 = arith.constant 0 : i32
    return %arg0, %c0_i32 : i32, i32
  }
  func.func @transform_1(%arg0: i32, %arg1: i32) -> (i32, i32) {
    %c0_i32 = arith.constant 0 : i32
    %c0_i32_0 = arith.constant 0 : i32
    return %c0_i32, %arg1 : i32, i32
  }
  func.func @transform_2(%arg0: i32, %arg1: i32) -> (i32, i32) {
    %c0_i32 = arith.constant 0 : i32
    %c0_i32_0 = arith.constant 0 : i32
    return %c0_i32, %arg1 : i32, i32
  }
  func.func @transform_3(%arg0: i32, %arg1: i32) -> (i32, i32) {
    %c0_i32 = arith.constant 0 : i32
    return %arg0, %arg1 : i32, i32
  }
  func.func @transform_4(%arg0: i32, %arg1: i32) -> (i32, i32) {
    %c0_i32 = arith.constant 0 : i32
    return %arg0, %arg1 : i32, i32
  }
}

module attributes {stable_mosaic.version = 11 : i64} {
  func.func @_embed_ln_kernel(%arg0: i32, %arg1: i32, %arg2: memref<1x8x64xf32, #tpu.memory_space<vmem>>, %arg3: memref<1x64xf32, #tpu.memory_space<vmem>>, %arg4: memref<1x64xf32, #tpu.memory_space<vmem>>, %arg5: memref<8x64xf32, #tpu.memory_space<vmem>>, %arg6: memref<1x8x64xf32, #tpu.memory_space<vmem>>) attributes {dimension_semantics = [#tpu.dimension_semantics<parallel>, #tpu.dimension_semantics<parallel>], iteration_bounds = array<i64: 2, 1>, scalar_prefetch = 0 : i64, scratch_operands = 0 : i64, tpu.core_type = #tpu.core_type<tc>, window_params = [{transform_indices = @transform_0, window_bounds = array<i64: 1, 8, 64>}, {pipeline_mode = #tpu.pipeline_mode<synchronous>, transform_indices = @transform_1, window_bounds = array<i64: 1, 64>}, {pipeline_mode = #tpu.pipeline_mode<synchronous>, transform_indices = @transform_2, window_bounds = array<i64: 1, 64>}, {transform_indices = @transform_3, window_bounds = array<i64: 8, 64>}, {transform_indices = @transform_4, window_bounds = array<i64: 1, 8, 64>}]} {
    %c0 = arith.constant 0 : index
    %c0_0 = arith.constant 0 : index
    %c0_1 = arith.constant 0 : index
    %0 = vector.load %arg2[%c0, %c0_0, %c0_1] : memref<1x8x64xf32, #tpu.memory_space<vmem>>, vector<1x8x64xf32>
    %1 = vector.shape_cast %0 : vector<1x8x64xf32> to vector<8x64xf32>
    %cst = arith.constant dense<0.000000e+00> : vector<8xf32>
    %2 = vector.multi_reduction <add>, %1, %cst [1] : vector<8x64xf32> to vector<8xf32>
    %3 = vector.shape_cast %2 : vector<8xf32> to vector<8x1xf32>
    %cst_2 = arith.constant 6.400000e+01 : f32
    %4 = vector.broadcast %cst_2 : f32 to vector<8x1xf32>
    %5 = arith.divf %3, %4 : vector<8x1xf32>
    %6 = vector.broadcast %5 : vector<8x1xf32> to vector<8x64xf32>
    %7 = arith.subf %1, %6 : vector<8x64xf32>
    %8 = arith.mulf %7, %7 : vector<8x64xf32>
    %cst_3 = arith.constant dense<0.000000e+00> : vector<8xf32>
    %9 = vector.multi_reduction <add>, %8, %cst_3 [1] : vector<8x64xf32> to vector<8xf32>
    %10 = vector.shape_cast %9 : vector<8xf32> to vector<8x1xf32>
    %cst_4 = arith.constant 6.400000e+01 : f32
    %11 = vector.broadcast %cst_4 : f32 to vector<8x1xf32>
    %12 = arith.divf %10, %11 : vector<8x1xf32>
    %13 = vector.broadcast %5 : vector<8x1xf32> to vector<8x64xf32>
    %14 = arith.subf %1, %13 : vector<8x64xf32>
    %cst_5 = arith.constant 9.99999974E-6 : f32
    %15 = vector.broadcast %cst_5 : f32 to vector<8x1xf32>
    %16 = arith.addf %12, %15 : vector<8x1xf32>
    %17 = math.rsqrt %16 : vector<8x1xf32>
    %18 = vector.broadcast %17 : vector<8x1xf32> to vector<8x64xf32>
    %19 = arith.mulf %14, %18 : vector<8x64xf32>
    %c0_6 = arith.constant 0 : index
    %c0_7 = arith.constant 0 : index
    %20 = vector.load %arg3[%c0_6, %c0_7] : memref<1x64xf32, #tpu.memory_space<vmem>>, vector<1x64xf32>
    %21 = vector.broadcast %20 : vector<1x64xf32> to vector<8x64xf32>
    %22 = arith.mulf %19, %21 : vector<8x64xf32>
    %c0_8 = arith.constant 0 : index
    %c0_9 = arith.constant 0 : index
    %23 = vector.load %arg4[%c0_8, %c0_9] : memref<1x64xf32, #tpu.memory_space<vmem>>, vector<1x64xf32>
    %24 = vector.broadcast %23 : vector<1x64xf32> to vector<8x64xf32>
    %25 = arith.addf %22, %24 : vector<8x64xf32>
    %c0_10 = arith.constant 0 : index
    %c0_11 = arith.constant 0 : index
    %26 = vector.load %arg5[%c0_10, %c0_11] : memref<8x64xf32, #tpu.memory_space<vmem>>, vector<8x64xf32>
    %27 = arith.addf %25, %26 : vector<8x64xf32>
    %c0_12 = arith.constant 0 : index
    %c0_13 = arith.constant 0 : index
    %c0_14 = arith.constant 0 : index
    %28 = vector.load %arg6[%c0_12, %c0_13, %c0_14] : memref<1x8x64xf32, #tpu.memory_space<vmem>>, vector<1x8x64xf32>
    %29 = vector.shape_cast %28 : vector<1x8x64xf32> to vector<8x64xf32>
    %30 = vector.shape_cast %27 : vector<8x64xf32> to vector<1x8x64xf32>
    tpu.vector_store %arg6[%c0_12, %c0_13, %c0_14], %30 {strides = array<i32>} : memref<1x8x64xf32, #tpu.memory_space<vmem>>, vector<1x8x64xf32>,
    return
  }
  func.func @transform_0(%arg0: i32, %arg1: i32) -> (i32, i32, i32) {
    %c0_i32 = arith.constant 0 : i32
    %c0_i32_0 = arith.constant 0 : i32
    return %arg0, %arg1, %c0_i32 : i32, i32, i32
  }
  func.func @transform_1(%arg0: i32, %arg1: i32) -> (i32, i32) {
    %c0_i32 = arith.constant 0 : i32
    %c0_i32_0 = arith.constant 0 : i32
    %c0_i32_1 = arith.constant 0 : i32
    return %c0_i32, %c0_i32_0 : i32, i32
  }
  func.func @transform_2(%arg0: i32, %arg1: i32) -> (i32, i32) {
    %c0_i32 = arith.constant 0 : i32
    %c0_i32_0 = arith.constant 0 : i32
    %c0_i32_1 = arith.constant 0 : i32
    return %c0_i32, %c0_i32_0 : i32, i32
  }
  func.func @transform_3(%arg0: i32, %arg1: i32) -> (i32, i32) {
    %c0_i32 = arith.constant 0 : i32
    %c0_i32_0 = arith.constant 0 : i32
    return %arg1, %c0_i32 : i32, i32
  }
  func.func @transform_4(%arg0: i32, %arg1: i32) -> (i32, i32, i32) {
    %c0_i32 = arith.constant 0 : i32
    %c0_i32_0 = arith.constant 0 : i32
    return %arg0, %arg1, %c0_i32 : i32, i32, i32
  }
}

module attributes {stable_mosaic.version = 11 : i64} {
  func.func @_attn_kernel(%arg0: i32, %arg1: i32, %arg2: memref<8x192xbf16, #tpu.memory_space<vmem>>, %arg3: memref<8x64xbf16, #tpu.memory_space<vmem>>) attributes {dimension_semantics = [#tpu.dimension_semantics<parallel>, #tpu.dimension_semantics<parallel>], iteration_bounds = array<i64: 2, 1>, scalar_prefetch = 0 : i64, scratch_operands = 0 : i64, tpu.core_type = #tpu.core_type<tc>, window_params = [{transform_indices = @transform_0, window_bounds = array<i64: 8, 192>}, {transform_indices = @transform_1, window_bounds = array<i64: 8, 64>}]} {
    %c0 = arith.constant 0 : index
    %c0_0 = arith.constant 0 : index
    %0 = vector.load %arg2[%c0, %c0_0] : memref<8x192xbf16, #tpu.memory_space<vmem>>, vector<8x64xbf16>
    %1 = arith.extf %0 : vector<8x64xbf16> to vector<8x64xf32>
    %cst = arith.constant 2.500000e-01 : f32
    %2 = vector.broadcast %cst : f32 to vector<8x64xf32>
    %3 = arith.mulf %1, %2 : vector<8x64xf32>
    %4 = arith.truncf %3 : vector<8x64xf32> to vector<8x64xbf16>
    %c0_1 = arith.constant 0 : index
    %c64 = arith.constant 64 : index
    %5 = vector.load %arg2[%c0_1, %c64] : memref<8x192xbf16, #tpu.memory_space<vmem>>, vector<8x64xbf16>
    %c0_2 = arith.constant 0 : index
    %c128 = arith.constant 128 : index
    %6 = vector.load %arg2[%c0_2, %c128] : memref<8x192xbf16, #tpu.memory_space<vmem>>, vector<8x64xbf16>
    %7 = tpu.iota {dimensions = array<i32: 0>} : vector<8x8xi32>
    %8 = tpu.iota {dimensions = array<i32: 1>} : vector<8x8xi32>
    %9 = arith.cmpi sle, %8, %7 : vector<8x8xi32>
    %10 = vector.extract_strided_slice %4 {offsets = [0, 0], sizes = [8, 16], strides = [1, 1]} : vector<8x64xbf16> to vector<8x16xbf16>
    %11 = vector.extract_strided_slice %5 {offsets = [0, 0], sizes = [8, 16], strides = [1, 1]} : vector<8x64xbf16> to vector<8x16xbf16>
    %12 = vector.extract_strided_slice %6 {offsets = [0, 0], sizes = [8, 16], strides = [1, 1]} : vector<8x64xbf16> to vector<8x16xbf16>
    %cst_3 = arith.constant dense<0.000000e+00> : vector<8x8xf32>
    %13 = tpu.matmul %10, %11, %cst_3 {dimension_numbers = #tpu.dot_dimension_numbers<[1], [1], [0], [0], [0, 0, 1, 0], [], []>} : vector<8x16xbf16>, vector<8x16xbf16>, vector<8x8xf32> -> vector<8x8xf32>
    %cst_4 = arith.constant -1.000000e+30 : f32
    %14 = vector.broadcast %cst_4 : f32 to vector<8x8xf32>
    %15 = arith.select %9, %13, %14 : vector<8x8xi1>, vector<8x8xf32>
    %cst_5 = arith.constant dense<0xFF800000> : vector<8xf32>
    %16 = vector.multi_reduction <maximumf>, %15, %cst_5 [1] : vector<8x8xf32> to vector<8xf32>
    %17 = vector.shape_cast %16 : vector<8xf32> to vector<8x1xf32>
    %18 = vector.broadcast %17 : vector<8x1xf32> to vector<8x8xf32>
    %19 = arith.subf %15, %18 : vector<8x8xf32>
    %20 = math.exp %19 : vector<8x8xf32>
    %cst_6 = arith.constant dense<0.000000e+00> : vector<8xf32>
    %21 = vector.multi_reduction <add>, %20, %cst_6 [1] : vector<8x8xf32> to vector<8xf32>
    %22 = vector.shape_cast %21 : vector<8xf32> to vector<8x1xf32>
    %23 = arith.truncf %20 : vector<8x8xf32> to vector<8x8xbf16>
    %cst_7 = arith.constant dense<0.000000e+00> : vector<8x16xf32>
    %24 = tpu.matmul %23, %12, %cst_7 {dimension_numbers = #tpu.dot_dimension_numbers<[1], [0], [0], [1], [0, 0, 1, 1], [], []>} : vector<8x8xbf16>, vector<8x16xbf16>, vector<8x16xf32> -> vector<8x16xf32>
    %25 = tpu.reciprocal %22 : vector<8x1xf32> -> vector<8x1xf32>
    %26 = vector.broadcast %25 : vector<8x1xf32> to vector<8x16xf32>
    %27 = arith.mulf %24, %26 : vector<8x16xf32>
    %28 = arith.truncf %27 : vector<8x16xf32> to vector<8x16xbf16>
    %c0_8 = arith.constant 0 : index
    %c0_9 = arith.constant 0 : index
    %29 = vector.load %arg3[%c0_8, %c0_9] : memref<8x64xbf16, #tpu.memory_space<vmem>>, vector<8x16xbf16>
    tpu.vector_store %arg3[%c0_8, %c0_9], %28 {strides = array<i32>} : memref<8x64xbf16, #tpu.memory_space<vmem>>, vector<8x16xbf16>,
    %30 = vector.extract_strided_slice %4 {offsets = [0, 16], sizes = [8, 16], strides = [1, 1]} : vector<8x64xbf16> to vector<8x16xbf16>
    %31 = vector.extract_strided_slice %5 {offsets = [0, 16], sizes = [8, 16], strides = [1, 1]} : vector<8x64xbf16> to vector<8x16xbf16>
    %32 = vector.extract_strided_slice %6 {offsets = [0, 16], sizes = [8, 16], strides = [1, 1]} : vector<8x64xbf16> to vector<8x16xbf16>
    %cst_10 = arith.constant dense<0.000000e+00> : vector<8x8xf32>
    %33 = tpu.matmul %30, %31, %cst_10 {dimension_numbers = #tpu.dot_dimension_numbers<[1], [1], [0], [0], [0, 0, 1, 0], [], []>} : vector<8x16xbf16>, vector<8x16xbf16>, vector<8x8xf32> -> vector<8x8xf32>
    %cst_11 = arith.constant -1.000000e+30 : f32
    %34 = vector.broadcast %cst_11 : f32 to vector<8x8xf32>
    %35 = arith.select %9, %33, %34 : vector<8x8xi1>, vector<8x8xf32>
    %cst_12 = arith.constant dense<0xFF800000> : vector<8xf32>
    %36 = vector.multi_reduction <maximumf>, %35, %cst_12 [1] : vector<8x8xf32> to vector<8xf32>
    %37 = vector.shape_cast %36 : vector<8xf32> to vector<8x1xf32>
    %38 = vector.broadcast %37 : vector<8x1xf32> to vector<8x8xf32>
    %39 = arith.subf %35, %38 : vector<8x8xf32>
    %40 = math.exp %39 : vector<8x8xf32>
    %cst_13 = arith.constant dense<0.000000e+00> : vector<8xf32>
    %41 = vector.multi_reduction <add>, %40, %cst_13 [1] : vector<8x8xf32> to vector<8xf32>
    %42 = vector.shape_cast %41 : vector<8xf32> to vector<8x1xf32>
    %43 = arith.truncf %40 : vector<8x8xf32> to vector<8x8xbf16>
    %cst_14 = arith.constant dense<0.000000e+00> : vector<8x16xf32>
    %44 = tpu.matmul %43, %32, %cst_14 {dimension_numbers = #tpu.dot_dimension_numbers<[1], [0], [0], [1], [0, 0, 1, 1], [], []>} : vector<8x8xbf16>, vector<8x16xbf16>, vector<8x16xf32> -> vector<8x16xf32>
    %45 = tpu.reciprocal %42 : vector<8x1xf32> -> vector<8x1xf32>
    %46 = vector.broadcast %45 : vector<8x1xf32> to vector<8x16xf32>
    %47 = arith.mulf %44, %46 : vector<8x16xf32>
    %48 = arith.truncf %47 : vector<8x16xf32> to vector<8x16xbf16>
    %c0_15 = arith.constant 0 : index
    %c16 = arith.constant 16 : index
    %49 = vector.load %arg3[%c0_15, %c16] : memref<8x64xbf16, #tpu.memory_space<vmem>>, vector<8x16xbf16>
    tpu.vector_store %arg3[%c0_15, %c16], %48 {strides = array<i32>} : memref<8x64xbf16, #tpu.memory_space<vmem>>, vector<8x16xbf16>,
    %50 = vector.extract_strided_slice %4 {offsets = [0, 32], sizes = [8, 16], strides = [1, 1]} : vector<8x64xbf16> to vector<8x16xbf16>
    %51 = vector.extract_strided_slice %5 {offsets = [0, 32], sizes = [8, 16], strides = [1, 1]} : vector<8x64xbf16> to vector<8x16xbf16>
    %52 = vector.extract_strided_slice %6 {offsets = [0, 32], sizes = [8, 16], strides = [1, 1]} : vector<8x64xbf16> to vector<8x16xbf16>
    %cst_16 = arith.constant dense<0.000000e+00> : vector<8x8xf32>
    %53 = tpu.matmul %50, %51, %cst_16 {dimension_numbers = #tpu.dot_dimension_numbers<[1], [1], [0], [0], [0, 0, 1, 0], [], []>} : vector<8x16xbf16>, vector<8x16xbf16>, vector<8x8xf32> -> vector<8x8xf32>
    %cst_17 = arith.constant -1.000000e+30 : f32
    %54 = vector.broadcast %cst_17 : f32 to vector<8x8xf32>
    %55 = arith.select %9, %53, %54 : vector<8x8xi1>, vector<8x8xf32>
    %cst_18 = arith.constant dense<0xFF800000> : vector<8xf32>
    %56 = vector.multi_reduction <maximumf>, %55, %cst_18 [1] : vector<8x8xf32> to vector<8xf32>
    %57 = vector.shape_cast %56 : vector<8xf32> to vector<8x1xf32>
    %58 = vector.broadcast %57 : vector<8x1xf32> to vector<8x8xf32>
    %59 = arith.subf %55, %58 : vector<8x8xf32>
    %60 = math.exp %59 : vector<8x8xf32>
    %cst_19 = arith.constant dense<0.000000e+00> : vector<8xf32>
    %61 = vector.multi_reduction <add>, %60, %cst_19 [1] : vector<8x8xf32> to vector<8xf32>
    %62 = vector.shape_cast %61 : vector<8xf32> to vector<8x1xf32>
    %63 = arith.truncf %60 : vector<8x8xf32> to vector<8x8xbf16>
    %cst_20 = arith.constant dense<0.000000e+00> : vector<8x16xf32>
    %64 = tpu.matmul %63, %52, %cst_20 {dimension_numbers = #tpu.dot_dimension_numbers<[1], [0], [0], [1], [0, 0, 1, 1], [], []>} : vector<8x8xbf16>, vector<8x16xbf16>, vector<8x16xf32> -> vector<8x16xf32>
    %65 = tpu.reciprocal %62 : vector<8x1xf32> -> vector<8x1xf32>
    %66 = vector.broadcast %65 : vector<8x1xf32> to vector<8x16xf32>
    %67 = arith.mulf %64, %66 : vector<8x16xf32>
    %68 = arith.truncf %67 : vector<8x16xf32> to vector<8x16xbf16>
    %c0_21 = arith.constant 0 : index
    %c32 = arith.constant 32 : index
    %69 = vector.load %arg3[%c0_21, %c32] : memref<8x64xbf16, #tpu.memory_space<vmem>>, vector<8x16xbf16>
    tpu.vector_store %arg3[%c0_21, %c32], %68 {strides = array<i32>} : memref<8x64xbf16, #tpu.memory_space<vmem>>, vector<8x16xbf16>,
    %70 = vector.extract_strided_slice %4 {offsets = [0, 48], sizes = [8, 16], strides = [1, 1]} : vector<8x64xbf16> to vector<8x16xbf16>
    %71 = vector.extract_strided_slice %5 {offsets = [0, 48], sizes = [8, 16], strides = [1, 1]} : vector<8x64xbf16> to vector<8x16xbf16>
    %72 = vector.extract_strided_slice %6 {offsets = [0, 48], sizes = [8, 16], strides = [1, 1]} : vector<8x64xbf16> to vector<8x16xbf16>
    %cst_22 = arith.constant dense<0.000000e+00> : vector<8x8xf32>
    %73 = tpu.matmul %70, %71, %cst_22 {dimension_numbers = #tpu.dot_dimension_numbers<[1], [1], [0], [0], [0, 0, 1, 0], [], []>} : vector<8x16xbf16>, vector<8x16xbf16>, vector<8x8xf32> -> vector<8x8xf32>
    %cst_23 = arith.constant -1.000000e+30 : f32
    %74 = vector.broadcast %cst_23 : f32 to vector<8x8xf32>
    %75 = arith.select %9, %73, %74 : vector<8x8xi1>, vector<8x8xf32>
    %cst_24 = arith.constant dense<0xFF800000> : vector<8xf32>
    %76 = vector.multi_reduction <maximumf>, %75, %cst_24 [1] : vector<8x8xf32> to vector<8xf32>
    %77 = vector.shape_cast %76 : vector<8xf32> to vector<8x1xf32>
    %78 = vector.broadcast %77 : vector<8x1xf32> to vector<8x8xf32>
    %79 = arith.subf %75, %78 : vector<8x8xf32>
    %80 = math.exp %79 : vector<8x8xf32>
    %cst_25 = arith.constant dense<0.000000e+00> : vector<8xf32>
    %81 = vector.multi_reduction <add>, %80, %cst_25 [1] : vector<8x8xf32> to vector<8xf32>
    %82 = vector.shape_cast %81 : vector<8xf32> to vector<8x1xf32>
    %83 = arith.truncf %80 : vector<8x8xf32> to vector<8x8xbf16>
    %cst_26 = arith.constant dense<0.000000e+00> : vector<8x16xf32>
    %84 = tpu.matmul %83, %72, %cst_26 {dimension_numbers = #tpu.dot_dimension_numbers<[1], [0], [0], [1], [0, 0, 1, 1], [], []>} : vector<8x8xbf16>, vector<8x16xbf16>, vector<8x16xf32> -> vector<8x16xf32>
    %85 = tpu.reciprocal %82 : vector<8x1xf32> -> vector<8x1xf32>
    %86 = vector.broadcast %85 : vector<8x1xf32> to vector<8x16xf32>
    %87 = arith.mulf %84, %86 : vector<8x16xf32>
    %88 = arith.truncf %87 : vector<8x16xf32> to vector<8x16xbf16>
    %c0_27 = arith.constant 0 : index
    %c48 = arith.constant 48 : index
    %89 = vector.load %arg3[%c0_27, %c48] : memref<8x64xbf16, #tpu.memory_space<vmem>>, vector<8x16xbf16>
    tpu.vector_store %arg3[%c0_27, %c48], %88 {strides = array<i32>} : memref<8x64xbf16, #tpu.memory_space<vmem>>, vector<8x16xbf16>,
    return
  }
  func.func @transform_0(%arg0: i32, %arg1: i32) -> (i32, i32) {
    %c0_i32 = arith.constant 0 : i32
    %c0_i32_0 = arith.constant 0 : i32
    return %arg0, %c0_i32 : i32, i32
  }
  func.func @transform_1(%arg0: i32, %arg1: i32) -> (i32, i32) {
    %c0_i32 = arith.constant 0 : i32
    return %arg0, %arg1 : i32, i32
  }
}

module attributes {stable_mosaic.version = 11 : i64} {
  func.func @_fused_matmul_kernel(%arg0: i32, %arg1: i32, %arg2: memref<16x256xbf16, #tpu.memory_space<vmem>>, %arg3: memref<256x64xbf16, #tpu.memory_space<vmem>>, %arg4: memref<1x64xf32, #tpu.memory_space<vmem>>, %arg5: memref<16x64xf32, #tpu.memory_space<vmem>>, %arg6: memref<16x64xf32, #tpu.memory_space<vmem>>, %arg7: memref<16x64xf32, #tpu.memory_space<vmem>>) attributes {dimension_semantics = [#tpu.dimension_semantics<parallel>, #tpu.dimension_semantics<parallel>], iteration_bounds = array<i64: 1, 1>, scalar_prefetch = 0 : i64, scratch_operands = 0 : i64, tpu.core_type = #tpu.core_type<tc>, window_params = [{transform_indices = @transform_0, window_bounds = array<i64: 16, 256>}, {transform_indices = @transform_1, window_bounds = array<i64: 256, 64>}, {transform_indices = @transform_2, window_bounds = array<i64: 1, 64>}, {transform_indices = @transform_3, window_bounds = array<i64: 16, 64>}, {transform_indices = @transform_4, window_bounds = array<i64: 16, 64>}, {transform_indices = @transform_5, window_bounds = array<i64: 16, 64>}]} {
    %c0 = arith.constant 0 : index
    %c0_0 = arith.constant 0 : index
    %0 = vector.load %arg2[%c0, %c0_0] : memref<16x256xbf16, #tpu.memory_space<vmem>>, vector<16x256xbf16>
    %c0_1 = arith.constant 0 : index
    %c0_2 = arith.constant 0 : index
    %1 = vector.load %arg3[%c0_1, %c0_2] : memref<256x64xbf16, #tpu.memory_space<vmem>>, vector<256x64xbf16>
    %cst = arith.constant dense<0.000000e+00> : vector<16x64xf32>
    %2 = tpu.matmul %0, %1, %cst {dimension_numbers = #tpu.dot_dimension_numbers<[1], [0], [0], [1], [0, 0, 1, 1], [], []>} : vector<16x256xbf16>, vector<256x64xbf16>, vector<16x64xf32> -> vector<16x64xf32>
    %c0_3 = arith.constant 0 : index
    %c0_4 = arith.constant 0 : index
    %3 = vector.load %arg4[%c0_3, %c0_4] : memref<1x64xf32, #tpu.memory_space<vmem>>, vector<1x64xf32>
    %4 = vector.broadcast %3 : vector<1x64xf32> to vector<16x64xf32>
    %5 = arith.addf %2, %4 : vector<16x64xf32>
    %c0_5 = arith.constant 0 : index
    %c0_6 = arith.constant 0 : index
    %6 = vector.load %arg5[%c0_5, %c0_6] : memref<16x64xf32, #tpu.memory_space<vmem>>, vector<16x64xf32>
    %7 = arith.addf %5, %6 : vector<16x64xf32>
    %c0_7 = arith.constant 0 : index
    %c0_8 = arith.constant 0 : index
    %8 = vector.load %arg6[%c0_7, %c0_8] : memref<16x64xf32, #tpu.memory_space<vmem>>, vector<16x64xf32>
    %9 = arith.addf %7, %8 : vector<16x64xf32>
    %c0_9 = arith.constant 0 : index
    %c0_10 = arith.constant 0 : index
    %10 = vector.load %arg7[%c0_9, %c0_10] : memref<16x64xf32, #tpu.memory_space<vmem>>, vector<16x64xf32>
    tpu.vector_store %arg7[%c0_9, %c0_10], %9 {strides = array<i32>} : memref<16x64xf32, #tpu.memory_space<vmem>>, vector<16x64xf32>,
    return
  }
  func.func @transform_0(%arg0: i32, %arg1: i32) -> (i32, i32) {
    %c0_i32 = arith.constant 0 : i32
    %c0_i32_0 = arith.constant 0 : i32
    return %arg0, %c0_i32 : i32, i32
  }
  func.func @transform_1(%arg0: i32, %arg1: i32) -> (i32, i32) {
    %c0_i32 = arith.constant 0 : i32
    %c0_i32_0 = arith.constant 0 : i32
    return %c0_i32, %arg1 : i32, i32
  }
  func.func @transform_2(%arg0: i32, %arg1: i32) -> (i32, i32) {
    %c0_i32 = arith.constant 0 : i32
    %c0_i32_0 = arith.constant 0 : i32
    return %c0_i32, %arg1 : i32, i32
  }
  func.func @transform_3(%arg0: i32, %arg1: i32) -> (i32, i32) {
    %c0_i32 = arith.constant 0 : i32
    return %arg0, %arg1 : i32, i32
  }
  func.func @transform_4(%arg0: i32, %arg1: i32) -> (i32, i32) {
    %c0_i32 = arith.constant 0 : i32
    return %arg0, %arg1 : i32, i32
  }
  func.func @transform_5(%arg0: i32, %arg1: i32) -> (i32, i32) {
    %c0_i32 = arith.constant 0 : i32
    return %arg0, %arg1 : i32, i32
  }
}

module attributes {stable_mosaic.version = 11 : i64} {
  func.func @_fused_matmul_kernel(%arg0: i32, %arg1: i32, %arg2: memref<16x64xf32, #tpu.memory_space<vmem>>, %arg3: memref<1x64xf32, #tpu.memory_space<vmem>>, %arg4: memref<1x64xf32, #tpu.memory_space<vmem>>, %arg5: memref<64x256xbf16, #tpu.memory_space<vmem>>, %arg6: memref<1x256xf32, #tpu.memory_space<vmem>>, %arg7: memref<16x256xbf16, #tpu.memory_space<vmem>>, %arg8: memref<16x64xbf16, #tpu.memory_space<vmem>>) attributes {dimension_semantics = [#tpu.dimension_semantics<parallel>, #tpu.dimension_semantics<arbitrary>], iteration_bounds = array<i64: 1, 1>, scalar_prefetch = 0 : i64, scratch_operands = 1 : i64, tpu.core_type = #tpu.core_type<tc>, window_params = [{transform_indices = @transform_0, window_bounds = array<i64: 16, 64>}, {pipeline_mode = #tpu.pipeline_mode<synchronous>, transform_indices = @transform_1, window_bounds = array<i64: 1, 64>}, {pipeline_mode = #tpu.pipeline_mode<synchronous>, transform_indices = @transform_2, window_bounds = array<i64: 1, 64>}, {transform_indices = @transform_3, window_bounds = array<i64: 64, 256>}, {transform_indices = @transform_4, window_bounds = array<i64: 1, 256>}, {transform_indices = @transform_5, window_bounds = array<i64: 16, 256>}]} {
    %c0_i32 = arith.constant 0 : i32
    %0 = arith.cmpi eq, %arg1, %c0_i32 : i32
    %1 = arith.extui %0 : i1 to i32
    %c0_i32_0 = arith.constant 0 : i32
    %2 = arith.cmpi ne, %1, %c0_i32_0 : i32
    scf.if %2 {
      %c0_11 = arith.constant 0 : index
      %c0_12 = arith.constant 0 : index
      %19 = vector.load %arg2[%c0_11, %c0_12] : memref<16x64xf32, #tpu.memory_space<vmem>>, vector<16x64xf32>
      %cst_13 = arith.constant dense<0.000000e+00> : vector<16xf32>
      %20 = vector.multi_reduction <add>, %19, %cst_13 [1] : vector<16x64xf32> to vector<16xf32>
      %21 = vector.shape_cast %20 : vector<16xf32> to vector<16x1xf32>
      %cst_14 = arith.constant 6.400000e+01 : f32
      %22 = vector.broadcast %cst_14 : f32 to vector<16x1xf32>
      %23 = arith.divf %21, %22 : vector<16x1xf32>
      %24 = vector.broadcast %23 : vector<16x1xf32> to vector<16x64xf32>
      %25 = arith.subf %19, %24 : vector<16x64xf32>
      %26 = arith.mulf %25, %25 : vector<16x64xf32>
      %cst_15 = arith.constant dense<0.000000e+00> : vector<16xf32>
      %27 = vector.multi_reduction <add>, %26, %cst_15 [1] : vector<16x64xf32> to vector<16xf32>
      %28 = vector.shape_cast %27 : vector<16xf32> to vector<16x1xf32>
      %cst_16 = arith.constant 6.400000e+01 : f32
      %29 = vector.broadcast %cst_16 : f32 to vector<16x1xf32>
      %30 = arith.divf %28, %29 : vector<16x1xf32>
      %31 = vector.broadcast %23 : vector<16x1xf32> to vector<16x64xf32>
      %32 = arith.subf %19, %31 : vector<16x64xf32>
      %cst_17 = arith.constant 9.99999974E-6 : f32
      %33 = vector.broadcast %cst_17 : f32 to vector<16x1xf32>
      %34 = arith.addf %30, %33 : vector<16x1xf32>
      %35 = math.rsqrt %34 : vector<16x1xf32>
      %36 = vector.broadcast %35 : vector<16x1xf32> to vector<16x64xf32>
      %37 = arith.mulf %32, %36 : vector<16x64xf32>
      %c0_18 = arith.constant 0 : index
      %c0_19 = arith.constant 0 : index
      %38 = vector.load %arg3[%c0_18, %c0_19] : memref<1x64xf32, #tpu.memory_space<vmem>>, vector<1x64xf32>
      %39 = vector.broadcast %38 : vector<1x64xf32> to vector<16x64xf32>
      %40 = arith.mulf %37, %39 : vector<16x64xf32>
      %c0_20 = arith.constant 0 : index
      %c0_21 = arith.constant 0 : index
      %41 = vector.load %arg4[%c0_20, %c0_21] : memref<1x64xf32, #tpu.memory_space<vmem>>, vector<1x64xf32>
      %42 = vector.broadcast %41 : vector<1x64xf32> to vector<16x64xf32>
      %43 = arith.addf %40, %42 : vector<16x64xf32>
      %44 = arith.truncf %43 : vector<16x64xf32> to vector<16x64xbf16>
      %c0_22 = arith.constant 0 : index
      %c0_23 = arith.constant 0 : index
      %45 = vector.load %arg8[%c0_22, %c0_23] : memref<16x64xbf16, #tpu.memory_space<vmem>>, vector<16x64xbf16>
      tpu.vector_store %arg8[%c0_22, %c0_23], %44 {strides = array<i32>} : memref<16x64xbf16, #tpu.memory_space<vmem>>, vector<16x64xbf16>,
    } else {
    }
    %c0 = arith.constant 0 : index
    %c0_1 = arith.constant 0 : index
    %3 = vector.load %arg8[%c0, %c0_1] : memref<16x64xbf16, #tpu.memory_space<vmem>>, vector<16x64xbf16>
    %c0_2 = arith.constant 0 : index
    %c0_3 = arith.constant 0 : index
    %4 = vector.load %arg5[%c0_2, %c0_3] : memref<64x256xbf16, #tpu.memory_space<vmem>>, vector<64x256xbf16>
    %cst = arith.constant dense<0.000000e+00> : vector<16x256xf32>
    %5 = tpu.matmul %3, %4, %cst {dimension_numbers = #tpu.dot_dimension_numbers<[1], [0], [0], [1], [0, 0, 1, 1], [], []>} : vector<16x64xbf16>, vector<64x256xbf16>, vector<16x256xf32> -> vector<16x256xf32>
    %c0_4 = arith.constant 0 : index
    %c0_5 = arith.constant 0 : index
    %6 = vector.load %arg6[%c0_4, %c0_5] : memref<1x256xf32, #tpu.memory_space<vmem>>, vector<1x256xf32>
    %7 = vector.broadcast %6 : vector<1x256xf32> to vector<16x256xf32>
    %8 = arith.addf %5, %7 : vector<16x256xf32>
    %cst_6 = arith.constant 5.000000e-01 : f32
    %9 = vector.broadcast %cst_6 : f32 to vector<16x256xf32>
    %10 = arith.mulf %9, %8 : vector<16x256xf32>
    %cst_7 = arith.constant 0.707106769 : f32
    %11 = vector.broadcast %cst_7 : f32 to vector<16x256xf32>
    %12 = arith.mulf %8, %11 : vector<16x256xf32>
    %13 = math.erf %12 : vector<16x256xf32>
    %cst_8 = arith.constant 1.000000e+00 : f32
    %14 = vector.broadcast %cst_8 : f32 to vector<16x256xf32>
    %15 = arith.addf %14, %13 : vector<16x256xf32>
    %16 = arith.mulf %10, %15 : vector<16x256xf32>
    %17 = arith.truncf %16 : vector<16x256xf32> to vector<16x256xbf16>
    %c0_9 = arith.constant 0 : index
    %c0_10 = arith.constant 0 : index
    %18 = vector.load %arg7[%c0_9, %c0_10] : memref<16x256xbf16, #tpu.memory_space<vmem>>, vector<16x256xbf16>
    tpu.vector_store %arg7[%c0_9, %c0_10], %17 {strides = array<i32>} : memref<16x256xbf16, #tpu.memory_space<vmem>>, vector<16x256xbf16>,
    return
  }
  func.func @transform_0(%arg0: i32, %arg1: i32) -> (i32, i32) {
    %c0_i32 = arith.constant 0 : i32
    %c0_i32_0 = arith.constant 0 : i32
    return %arg0, %c0_i32 : i32, i32
  }
  func.func @transform_1(%arg0: i32, %arg1: i32) -> (i32, i32) {
    %c0_i32 = arith.constant 0 : i32
    %c0_i32_0 = arith.constant 0 : i32
    %c0_i32_1 = arith.constant 0 : i32
    return %c0_i32, %c0_i32_0 : i32, i32
  }
  func.func @transform_2(%arg0: i32, %arg1: i32) -> (i32, i32) {
    %c0_i32 = arith.constant 0 : i32
    %c0_i32_0 = arith.constant 0 : i32
    %c0_i32_1 = arith.constant 0 : i32
    return %c0_i32, %c0_i32_0 : i32, i32
  }
  func.func @transform_3(%arg0: i32, %arg1: i32) -> (i32, i32) {
    %c0_i32 = arith.constant 0 : i32
    %c0_i32_0 = arith.constant 0 : i32
    return %c0_i32, %arg1 : i32, i32
  }
  func.func @transform_4(%arg0: i32, %arg1: i32) -> (i32, i32) {
    %c0_i32 = arith.constant 0 : i32
    %c0_i32_0 = arith.constant 0 : i32
    return %c0_i32, %arg1 : i32, i32
  }
  func.func @transform_5(%arg0: i32, %arg1: i32) -> (i32, i32) {
    %c0_i32 = arith.constant 0 : i32
    return %arg0, %arg1 : i32, i32
  }
}

module attributes {stable_mosaic.version = 11 : i64} {
  func.func @_fused_matmul_kernel(%arg0: i32, %arg1: i32, %arg2: memref<16x64xf32, #tpu.memory_space<vmem>>, %arg3: memref<1x64xf32, #tpu.memory_space<vmem>>, %arg4: memref<1x64xf32, #tpu.memory_space<vmem>>, %arg5: memref<64x256xbf16, #tpu.memory_space<vmem>>, %arg6: memref<16x256xf32, #tpu.memory_space<vmem>>, %arg7: memref<16x64xbf16, #tpu.memory_space<vmem>>) attributes {dimension_semantics = [#tpu.dimension_semantics<parallel>, #tpu.dimension_semantics<arbitrary>], iteration_bounds = array<i64: 1, 1>, scalar_prefetch = 0 : i64, scratch_operands = 1 : i64, tpu.core_type = #tpu.core_type<tc>, window_params = [{transform_indices = @transform_0, window_bounds = array<i64: 16, 64>}, {pipeline_mode = #tpu.pipeline_mode<synchronous>, transform_indices = @transform_1, window_bounds = array<i64: 1, 64>}, {pipeline_mode = #tpu.pipeline_mode<synchronous>, transform_indices = @transform_2, window_bounds = array<i64: 1, 64>}, {transform_indices = @transform_3, window_bounds = array<i64: 64, 256>}, {transform_indices = @transform_4, window_bounds = array<i64: 16, 256>}]} {
    %c0_i32 = arith.constant 0 : i32
    %0 = arith.cmpi eq, %arg1, %c0_i32 : i32
    %1 = arith.extui %0 : i1 to i32
    %c0_i32_0 = arith.constant 0 : i32
    %2 = arith.cmpi ne, %1, %c0_i32_0 : i32
    scf.if %2 {
      %c0_6 = arith.constant 0 : index
      %c0_7 = arith.constant 0 : index
      %7 = vector.load %arg2[%c0_6, %c0_7] : memref<16x64xf32, #tpu.memory_space<vmem>>, vector<16x64xf32>
      %cst_8 = arith.constant dense<0.000000e+00> : vector<16xf32>
      %8 = vector.multi_reduction <add>, %7, %cst_8 [1] : vector<16x64xf32> to vector<16xf32>
      %9 = vector.shape_cast %8 : vector<16xf32> to vector<16x1xf32>
      %cst_9 = arith.constant 6.400000e+01 : f32
      %10 = vector.broadcast %cst_9 : f32 to vector<16x1xf32>
      %11 = arith.divf %9, %10 : vector<16x1xf32>
      %12 = vector.broadcast %11 : vector<16x1xf32> to vector<16x64xf32>
      %13 = arith.subf %7, %12 : vector<16x64xf32>
      %14 = arith.mulf %13, %13 : vector<16x64xf32>
      %cst_10 = arith.constant dense<0.000000e+00> : vector<16xf32>
      %15 = vector.multi_reduction <add>, %14, %cst_10 [1] : vector<16x64xf32> to vector<16xf32>
      %16 = vector.shape_cast %15 : vector<16xf32> to vector<16x1xf32>
      %cst_11 = arith.constant 6.400000e+01 : f32
      %17 = vector.broadcast %cst_11 : f32 to vector<16x1xf32>
      %18 = arith.divf %16, %17 : vector<16x1xf32>
      %19 = vector.broadcast %11 : vector<16x1xf32> to vector<16x64xf32>
      %20 = arith.subf %7, %19 : vector<16x64xf32>
      %cst_12 = arith.constant 9.99999974E-6 : f32
      %21 = vector.broadcast %cst_12 : f32 to vector<16x1xf32>
      %22 = arith.addf %18, %21 : vector<16x1xf32>
      %23 = math.rsqrt %22 : vector<16x1xf32>
      %24 = vector.broadcast %23 : vector<16x1xf32> to vector<16x64xf32>
      %25 = arith.mulf %20, %24 : vector<16x64xf32>
      %c0_13 = arith.constant 0 : index
      %c0_14 = arith.constant 0 : index
      %26 = vector.load %arg3[%c0_13, %c0_14] : memref<1x64xf32, #tpu.memory_space<vmem>>, vector<1x64xf32>
      %27 = vector.broadcast %26 : vector<1x64xf32> to vector<16x64xf32>
      %28 = arith.mulf %25, %27 : vector<16x64xf32>
      %c0_15 = arith.constant 0 : index
      %c0_16 = arith.constant 0 : index
      %29 = vector.load %arg4[%c0_15, %c0_16] : memref<1x64xf32, #tpu.memory_space<vmem>>, vector<1x64xf32>
      %30 = vector.broadcast %29 : vector<1x64xf32> to vector<16x64xf32>
      %31 = arith.addf %28, %30 : vector<16x64xf32>
      %32 = arith.truncf %31 : vector<16x64xf32> to vector<16x64xbf16>
      %c0_17 = arith.constant 0 : index
      %c0_18 = arith.constant 0 : index
      %33 = vector.load %arg7[%c0_17, %c0_18] : memref<16x64xbf16, #tpu.memory_space<vmem>>, vector<16x64xbf16>
      tpu.vector_store %arg7[%c0_17, %c0_18], %32 {strides = array<i32>} : memref<16x64xbf16, #tpu.memory_space<vmem>>, vector<16x64xbf16>,
    } else {
    }
    %c0 = arith.constant 0 : index
    %c0_1 = arith.constant 0 : index
    %3 = vector.load %arg7[%c0, %c0_1] : memref<16x64xbf16, #tpu.memory_space<vmem>>, vector<16x64xbf16>
    %c0_2 = arith.constant 0 : index
    %c0_3 = arith.constant 0 : index
    %4 = vector.load %arg5[%c0_2, %c0_3] : memref<64x256xbf16, #tpu.memory_space<vmem>>, vector<64x256xbf16>
    %cst = arith.constant dense<0.000000e+00> : vector<16x256xf32>
    %5 = tpu.matmul %3, %4, %cst {dimension_numbers = #tpu.dot_dimension_numbers<[1], [0], [0], [1], [0, 0, 1, 1], [], []>} : vector<16x64xbf16>, vector<64x256xbf16>, vector<16x256xf32> -> vector<16x256xf32>
    %c0_4 = arith.constant 0 : index
    %c0_5 = arith.constant 0 : index
    %6 = vector.load %arg6[%c0_4, %c0_5] : memref<16x256xf32, #tpu.memory_space<vmem>>, vector<16x256xf32>
    tpu.vector_store %arg6[%c0_4, %c0_5], %5 {strides = array<i32>} : memref<16x256xf32, #tpu.memory_space<vmem>>, vector<16x256xf32>,
    return
  }
  func.func @transform_0(%arg0: i32, %arg1: i32) -> (i32, i32) {
    %c0_i32 = arith.constant 0 : i32
    %c0_i32_0 = arith.constant 0 : i32
    return %arg0, %c0_i32 : i32, i32
  }
  func.func @transform_1(%arg0: i32, %arg1: i32) -> (i32, i32) {
    %c0_i32 = arith.constant 0 : i32
    %c0_i32_0 = arith.constant 0 : i32
    %c0_i32_1 = arith.constant 0 : i32
    return %c0_i32, %c0_i32_0 : i32, i32
  }
  func.func @transform_2(%arg0: i32, %arg1: i32) -> (i32, i32) {
    %c0_i32 = arith.constant 0 : i32
    %c0_i32_0 = arith.constant 0 : i32
    %c0_i32_1 = arith.constant 0 : i32
    return %c0_i32, %c0_i32_0 : i32, i32
  }
  func.func @transform_3(%arg0: i32, %arg1: i32) -> (i32, i32) {
    %c0_i32 = arith.constant 0 : i32
    %c0_i32_0 = arith.constant 0 : i32
    return %c0_i32, %arg1 : i32, i32
  }
  func.func @transform_4(%arg0: i32, %arg1: i32) -> (i32, i32) {
    %c0_i32 = arith.constant 0 : i32
    return %arg0, %arg1 : i32, i32
  }
}

</mosaic_0001>

<llo_original>
// kernel: transformer_forward.15
$region0: #{transformer_forward.15}
  #allocation0 [shape = 'u32[]', space=smem, size = 0x4, offset = 0x4, fixed_abs, tag = 'smem constant byte address 0x4 - core index']
  #allocation1 [shape = 'u32[144,128]{1,0:T(1,128)}', space=vmem, size = 0x12000, scoped, tag = 'internal scratch']
  %s0 = inlined_call_operand.vmem [shape: bf16[16,64], index: 0, kind: input, shape index: {}]
  %s1 = inlined_call_operand.vmem [shape: bf16[64,64], index: 1, kind: input, shape index: {}]
  %s2 = inlined_call_operand.vmem [shape: f32[1,64], index: 2, kind: input, shape index: {}]
  %s3 = inlined_call_operand.vmem [shape: f32[16,64], index: 3, kind: input, shape index: {}]
  %s4 = inlined_call_operand.vmem [shape: f32[16,64], index: 4, kind: output, shape index: {}]
  %s5 = sld [smem:[#allocation0]]
  $region26: #{transformer_forward.15} parent=0
    _
  %s7 = ssub.s32 1, %s5
  %s8 = scalar_select 0, %s7, %s5
  // Predicated region
  $region2: #{transformer_forward.15} parent=0 // pred_check
    _
  $region3: #{transformer_forward.15} parent=0 // pred_check_branch
    %10 = sbr.rel (0) target = $region5
  $region4: #{transformer_forward.15} parent=0 // pred_region
    _
  $region5: #{transformer_forward.15} parent=0 // pred_fallthru
    _
  // Predicated region
  $region6: #{transformer_forward.15} parent=0 // pred_check
    _
  $region7: #{transformer_forward.15} parent=0 // pred_check_branch
    %12 = sbr.rel (0) target = $region9
  $region8: #{transformer_forward.15} parent=0 // pred_region
    _
  $region9: #{transformer_forward.15} parent=0 // pred_fallthru
    _
  // Predicated region
  $region10: #{transformer_forward.15} parent=0 // pred_check
    _
  $region11: #{transformer_forward.15} parent=0 // pred_check_branch
    %14 = sbr.rel (0) target = $region13
  $region12: #{transformer_forward.15} parent=0 // pred_region
    _
  $region13: #{transformer_forward.15} parent=0 // pred_fallthru
    _
  // Predicated region
  $region14: #{transformer_forward.15} parent=0 // pred_check
    _
  $region15: #{transformer_forward.15} parent=0 // pred_check_branch
    %16 = sbr.rel (0) target = $region17
  $region16: #{transformer_forward.15} parent=0 // pred_region
    _
  $region17: #{transformer_forward.15} parent=0 // pred_fallthru
    _
  %v18 = vld [vmem:[%s0] sm:$0xf]
  %v19 = vld [vmem:[%s0 + $0x4] sm:$0xf]
  %v20 = vld [vmem:[%s1] sm:$0xf]
  %v21 = vld [vmem:[%s1 + $0x4] sm:$0xf]
  %v22 = vld [vmem:[%s1 + $0x8] sm:$0xf]
  %v23 = vld [vmem:[%s1 + $0xc] sm:$0xf]
  %v24 = vld [vmem:[%s1 + $0x10] sm:$0xf]
  %v25 = vld [vmem:[%s1 + $0x14] sm:$0xf]
  %v26 = vld [vmem:[%s1 + $0x18] sm:$0xf]
  %v27 = vld [vmem:[%s1 + $0x1c] sm:$0xf]
  %v28 = vld [vmem:[%s2] sm:$0x1]
  %v30 = vlaneseq
  %v31 = vshrl.u32 %v30, 7
  %v32 = vsub.s32 0, %v31
  %v33 = vrot.slane %v28, %v32
  %v37 = vunpack.c.l.b16 %v18
  %v38 = vunpack.c.l.b16 %v19
  %v39 = vpack.c.b16 %v38, %v37
  %v48 = vunpack.c.l.b16 %v20
  %v49 = vunpack.c.l.b16 %v21
  %v50 = vunpack.c.l.b16 %v22
  %v51 = vunpack.c.l.b16 %v23
  %v52 = vunpack.c.l.b16 %v24
  %v53 = vunpack.c.l.b16 %v25
  %v54 = vunpack.c.l.b16 %v26
  %v55 = vunpack.c.l.b16 %v27
  %v56 = vpack.c.b16 %v49, %v48
  %v57 = vpack.c.b16 %v51, %v50
  %v58 = vpack.c.b16 %v53, %v52
  %v59 = vpack.c.b16 %v55, %v54
  %vm64 = vcmask 523264
  %v66 = vsel %vm64, %v39, 0
  %68 = vmatprep.subr.bf16.mxu0 0
  %69 = vmatpush1.bf16.msra.mxu0 0
  %70 = vmatprep.subr.bf16.mxu0 0
  %71 = vmatpush1.bf16.msra.mxu0 0
  %72 = vmatprep.subr.bf16.mxu0 0
  %73 = vmatpush1.bf16.msra.mxu0 0
  %74 = vmatprep.subr.bf16.mxu0 0
  %75 = vmatpush1.bf16.msra.mxu0 0
  %76 = vmatprep.subr.bf16.mxu0 0
  %77 = vmatpush1.bf16.msra.mxu0 %v59
  %78 = vmatprep.subr.bf16.mxu0 0
  %79 = vmatpush1.bf16.msra.mxu0 %v58
  %80 = vmatprep.subr.bf16.mxu0 0
  %81 = vmatpush1.bf16.msra.mxu0 %v57
  %82 = vmatprep.subr.bf16.mxu0 0
  %83 = vmatpush1.bf16.msra.mxu0 %v56
  %84 = vmatprep.subr.bf16.mxu0 0
  %85 = vmatpush2.bf16.msra.mxu0 0
  %86 = vmatprep.subr.bf16.mxu0 0
  %87 = vmatpush2.bf16.msra.mxu0 0
  %88 = vmatprep.subr.bf16.mxu0 0
  %89 = vmatpush2.bf16.msra.mxu0 0
  %90 = vmatprep.subr.bf16.mxu0 0
  %91 = vmatpush2.bf16.msra.mxu0 0
  %92 = vmatprep.subr.bf16.mxu0 0
  %93 = vmatpush2.bf16.msra.mxu0 0
  %94 = vmatprep.subr.bf16.mxu0 0
  %95 = vmatpush2.bf16.msra.mxu0 0
  %96 = vmatprep.subr.bf16.mxu0 0
  %97 = vmatpush2.bf16.msra.mxu0 0
  %98 = vmatprep.subr.bf16.mxu0 0
  %99 = vmatpush2.bf16.msra.mxu0 0
  %100 = vmatprep.mubr.bf16.mxu0 0
  %101 = vmatmul.mubr.bf16.gmra.mxu0 %v66
  %v102 = vpop.f32.mrf.mxu0
  %v103 = vadd.f32 %v33, %v102
  %v104 = vpop.f32.mrf.mxu0
  %v105 = vpop.f32.mrf.mxu0
  %v106 = vadd.f32 %v33, %v105
  %v107 = vpop.f32.mrf.mxu0
  %108 = vdwg.mxu0
  %v109 = vld [vmem:[%s3] sm:$0xff]
  %v110 = vld [vmem:[%s3 + $0x8] sm:$0xff]
  %v111 = vadd.f32 %v103, %v109
  %v112 = vadd.f32 %v106, %v110
  %113 = vst.msk [vmem:[%s4] sm:$0xff] %vm64, %v111
  %114 = vst.msk [vmem:[%s4 + $0x8] sm:$0xff] %vm64, %v112
  // Predicated region
  $region18: #{transformer_forward.15} parent=0 // pred_check
    _
  $region19: #{transformer_forward.15} parent=0 // pred_check_branch
    %116 = sbr.rel (0) target = $region21
  $region20: #{transformer_forward.15} parent=0 // pred_region
    _
  $region21: #{transformer_forward.15} parent=0 // pred_fallthru
    _
  // Predicated region
  $region22: #{transformer_forward.15} parent=0 // pred_check
    _
  $region23: #{transformer_forward.15} parent=0 // pred_check_branch
    %118 = sbr.rel (0) target = $region25
  $region24: #{transformer_forward.15} parent=0 // pred_region
    _
  $region25: #{transformer_forward.15} parent=0 // pred_fallthru
    _

// kernel: transformer_forward.12
$region0: #{transformer_forward.12}
  #allocation0 [shape = 'u32[]', space=smem, size = 0x4, offset = 0x4, fixed_abs, tag = 'smem constant byte address 0x4 - core index']
  #allocation1 [shape = 'u32[144,128]{1,0:T(1,128)}', space=vmem, size = 0x12000, scoped, tag = 'internal scratch']
  %s0 = inlined_call_operand.vmem [shape: f32[2,8,64], index: 0, kind: input, shape index: {}]
  %s1 = inlined_call_operand.vmem [shape: f32[1,64], index: 1, kind: input, shape index: {}]
  %s2 = inlined_call_operand.vmem [shape: f32[1,64], index: 2, kind: input, shape index: {}]
  %s3 = inlined_call_operand.vmem [shape: f32[8,64], index: 3, kind: input, shape index: {}]
  %s4 = inlined_call_operand.vmem [shape: f32[2,8,64], index: 4, kind: output, shape index: {}]
  %s5 = sld [smem:[#allocation0]]
  $region49: #{transformer_forward.12} parent=0
    _
  %s7 = ssub.s32 1, %s5
  %s8 = scalar_select 0, %s7, %s5
  loop: start=0, step=1, limit=4
  $region2: #{transformer_forward.12} parent=0 // loop_pre_header
    _
  $region3: #{transformer_forward.12} parent=0 // loop_header
    %s10 = sphi 0, %s14
    %p11 = scmp.ge.s32.totalorder %s10, 4
    %s17 = sphi 0, %s29
    %s18 = sphi 0, %s25
    %s19 = sphi 0, %s17
    %s20 = sphi 0, %s18
    %s21 = sphi 0, %s19
    %s22 = sphi 0, %s20
    %s34 = sphi 0, %s36
    %s37 = sphi 0, %s34
    %s38 = sphi 0, %s37
    %s54 = sphi 0, %s38
    %s58 = sphi 0, %s58
    %s60 = sphi 0, %s58
    %s61 = sphi 0, %s60
    %s75 = sphi 0, %s61
    %s79 = sphi 0, %s79
    %s81 = sphi 0, %s79
    %s82 = sphi 0, %s81
    %s96 = sphi 0, %s82
    %s102 = sphi 0, %s104
    %s105 = sphi 0, %s102
    %s106 = sphi 0, %s105
    %s122 = sphi 0, %s106
    %s130 = sphi 0, %s132
    %s133 = sphi 0, %s130
    %s134 = sphi 0, %s133
    %s150 = sphi 0, %s134
  $region4: #{transformer_forward.12} parent=0 // loop_header_branch
    %13 = sbr.rel (%p11) target = $region8
  $region5: #{transformer_forward.12} parent=0 // loop_body
    %s15 = ssub.s32 %s10, 1
    %s16 = ssub.s32 %s10, 2
    %s23 = sadd.s32 1, %s18
    %p24 = scmp.ge.s32.totalorder %s23, 1
    %s25 = scalar_select %p24, 0, %s23
    %s26 = sadd.s32 1, %s17
    %s27 = scalar_select %p24, %s26, %s17
    %p28 = scmp.ge.s32.totalorder %s27, 2
    %s29 = scalar_select %p28, 0, %s27
    %s30 = ssub.s32 %s17, %s29
    %s31 = ssub.s32 %s18, %s25
    %s32 = sor.u32 %s30, %s31
    %p33 = scmp.eq.s32.totalorder %s32, 0
    %s35 = sadd.s32 %s34, 1
    %s36 = scalar_select %p33, %s34, %s35
    %p39 = pneg %p33
    %p40 = scmp.eq.s32.totalorder %s10, 1
    %p41 = por %p39, %p40
    %p42 = scmp.ne.s32.totalorder %s34, %s37
    %p43 = scmp.eq.s32.totalorder %s10, 0
    %p44 = por %p42, %p43
    %p45 = scmp.ne.s32.totalorder %s34, %s37
    %p46 = scmp.eq.s32.totalorder %s15, 1
    %p47 = por %p45, %p46
    %p48 = scmp.ne.s32.totalorder %s37, %s38
    %p49 = scmp.eq.s32.totalorder %s15, 0
    %p50 = por %p48, %p49
    %p51 = scmp.ne.s32.totalorder %s37, %s38
    %p52 = scmp.eq.s32.totalorder %s16, 1
    %p53 = por %p51, %p52
    %p55 = scmp.ne.s32.totalorder %s38, %s54
    %p56 = scmp.eq.s32.totalorder %s16, 0
    %p57 = por %p55, %p56
    %s59 = sadd.s32 %s58, 1
    %p62 = scmp.eq.s32.totalorder %s10, 1
    %p63 = scmp.ne.s32.totalorder %s58, %s60
    %p64 = scmp.eq.s32.totalorder %s10, 0
    %p65 = por %p63, %p64
    %p66 = scmp.ne.s32.totalorder %s58, %s60
    %p67 = scmp.eq.s32.totalorder %s15, 1
    %p68 = por %p66, %p67
    %p69 = scmp.ne.s32.totalorder %s60, %s61
    %p70 = scmp.eq.s32.totalorder %s15, 0
    %p71 = por %p69, %p70
    %p72 = scmp.ne.s32.totalorder %s60, %s61
    %p73 = scmp.eq.s32.totalorder %s16, 1
    %p74 = por %p72, %p73
    %p76 = scmp.ne.s32.totalorder %s61, %s75
    %p77 = scmp.eq.s32.totalorder %s16, 0
    %p78 = por %p76, %p77
    %s80 = sadd.s32 %s79, 1
    %p83 = scmp.eq.s32.totalorder %s10, 1
    %p84 = scmp.ne.s32.totalorder %s79, %s81
    %p85 = scmp.eq.s32.totalorder %s10, 0
    %p86 = por %p84, %p85
    %p87 = scmp.ne.s32.totalorder %s79, %s81
    %p88 = scmp.eq.s32.totalorder %s15, 1
    %p89 = por %p87, %p88
    %p90 = scmp.ne.s32.totalorder %s81, %s82
    %p91 = scmp.eq.s32.totalorder %s15, 0
    %p92 = por %p90, %p91
    %p93 = scmp.ne.s32.totalorder %s81, %s82
    %p94 = scmp.eq.s32.totalorder %s16, 1
    %p95 = por %p93, %p94
    %p97 = scmp.ne.s32.totalorder %s82, %s96
    %p98 = scmp.eq.s32.totalorder %s16, 0
    %p99 = por %p97, %p98
    %s100 = ssub.s32 %s18, %s25
    %p101 = scmp.eq.s32.totalorder %s100, 0
    %s103 = sadd.s32 %s102, 1
    %s104 = scalar_select %p101, %s102, %s103
    %p107 = pneg %p101
    %p108 = scmp.eq.s32.totalorder %s10, 1
    %p109 = por %p107, %p108
    %p110 = scmp.ne.s32.totalorder %s102, %s105
    %p111 = scmp.eq.s32.totalorder %s10, 0
    %p112 = por %p110, %p111
    %p113 = scmp.ne.s32.totalorder %s102, %s105
    %p114 = scmp.eq.s32.totalorder %s15, 1
    %p115 = por %p113, %p114
    %p116 = scmp.ne.s32.totalorder %s105, %s106
    %p117 = scmp.eq.s32.totalorder %s15, 0
    %p118 = por %p116, %p117
    %p119 = scmp.ne.s32.totalorder %s105, %s106
    %p120 = scmp.eq.s32.totalorder %s16, 1
    %p121 = por %p119, %p120
    %p123 = scmp.ne.s32.totalorder %s106, %s122
    %p124 = scmp.eq.s32.totalorder %s16, 0
    %p125 = por %p123, %p124
    %s126 = ssub.s32 %s17, %s29
    %s127 = ssub.s32 %s18, %s25
    %s128 = sor.u32 %s126, %s127
    %p129 = scmp.eq.s32.totalorder %s128, 0
    %s131 = sadd.s32 %s130, 1
    %s132 = scalar_select %p129, %s130, %s131
    %p135 = pneg %p129
    %p136 = scmp.eq.s32.totalorder %s10, 1
    %p137 = por %p135, %p136
    %p138 = scmp.ne.s32.totalorder %s130, %s133
    %p139 = scmp.eq.s32.totalorder %s10, 0
    %p140 = por %p138, %p139
    %p141 = scmp.ne.s32.totalorder %s130, %s133
    %p142 = scmp.eq.s32.totalorder %s15, 1
    %p143 = por %p141, %p142
    %p144 = scmp.ne.s32.totalorder %s133, %s134
    %p145 = scmp.eq.s32.totalorder %s15, 0
    %p146 = por %p144, %p145
    %p147 = scmp.ne.s32.totalorder %s133, %s134
    %p148 = scmp.eq.s32.totalorder %s16, 1
    %p149 = por %p147, %p148
    %p151 = scmp.ne.s32.totalorder %s134, %s150
    %p152 = scmp.eq.s32.totalorder %s16, 0
    %p153 = por %p151, %p152
    %p154 = scmp.le.s32.totalorder 1, %s10
    %p155 = scmp.lt.s32.totalorder %s10, 3
    %p156 = pnand %p154, %p155
    %p157 = pneg %p156
    // Predicated region
    $region9: #{transformer_forward.12} parent=5 // pred_check
      _
    $region10: #{transformer_forward.12} parent=5 // pred_check_branch
      %159 = sbr.rel (%p156) target = $region12
    $region11: #{transformer_forward.12} parent=5 // pred_region
      %s160 = ssub.s32 %s10, 1
      // Predicated region
      $region13: #{transformer_forward.12} parent=11 // pred_check
        %p161 = pneg %p71
      $region14: #{transformer_forward.12} parent=11 // pred_check_branch
        %163 = sbr.rel (%p161) target = $region16
      $region15: #{transformer_forward.12} parent=11 // pred_region
        _
      $region16: #{transformer_forward.12} parent=11 // pred_fallthru
        _
      // Predicated region
      $region17: #{transformer_forward.12} parent=11 // pred_check
        %p164 = pneg %p92
      $region18: #{transformer_forward.12} parent=11 // pred_check_branch
        %166 = sbr.rel (%p164) target = $region20
      $region19: #{transformer_forward.12} parent=11 // pred_region
        _
      $region20: #{transformer_forward.12} parent=11 // pred_fallthru
        _
      // Predicated region
      $region21: #{transformer_forward.12} parent=11 // pred_check
        %p167 = pneg %p118
      $region22: #{transformer_forward.12} parent=11 // pred_check_branch
        %169 = sbr.rel (%p167) target = $region24
      $region23: #{transformer_forward.12} parent=11 // pred_region
        %p170 = scmp.lt.s32.totalorder %s20, 0
        %s171 = scalar_select %p170, %s20, 0
        %s172 = smul.addr %s171, 8
        %s173 = scalar_lea.vmem %s3, %s172
      $region24: #{transformer_forward.12} parent=11 // pred_fallthru
        _
    $region12: #{transformer_forward.12} parent=5 // pred_fallthru
      _
    %p174 = scmp.lt.s32.totalorder %s10, 2
    // Predicated region
    $region25: #{transformer_forward.12} parent=5 // pred_check
      %p175 = pneg %p174
    $region26: #{transformer_forward.12} parent=5 // pred_check_branch
      %177 = sbr.rel (%p175) target = $region28
    $region27: #{transformer_forward.12} parent=5 // pred_region
      // Predicated region
      $region29: #{transformer_forward.12} parent=27 // pred_check
        %p178 = pneg %p44
      $region30: #{transformer_forward.12} parent=27 // pred_check_branch
        %180 = sbr.rel (%p178) target = $region32
      $region31: #{transformer_forward.12} parent=27 // pred_region
        %p181 = scmp.lt.s32.totalorder %s17, 1
        %s182 = scalar_select %p181, %s17, 1
        %p183 = scmp.lt.s32.totalorder %s18, 0
        %s184 = scalar_select %p183, %s18, 0
        %s185 = sadd.s32 %s184, %s182
        %s186 = smul.addr %s185, 8
        %s187 = scalar_lea.vmem %s0, %s186
      $region32: #{transformer_forward.12} parent=27 // pred_fallthru
        _
    $region28: #{transformer_forward.12} parent=5 // pred_fallthru
      _
    %p188 = scmp.le.s32.totalorder 1, %s10
    %p189 = scmp.lt.s32.totalorder %s10, 3
    %p190 = pnand %p188, %p189
    %p191 = pneg %p190
    // Predicated region
    $region33: #{transformer_forward.12} parent=5 // pred_check
      _
    $region34: #{transformer_forward.12} parent=5 // pred_check_branch
      %193 = sbr.rel (%p190) target = $region36
    $region35: #{transformer_forward.12} parent=5 // pred_region
      %s194 = ssub.s32 %s10, 1
      %p195 = scmp.lt.s32.totalorder %s19, 1
      %s196 = scalar_select %p195, %s19, 1
      %p197 = scmp.lt.s32.totalorder %s20, 0
      %s198 = scalar_select %p197, %s20, 0
      %s199 = sadd.s32 %s198, %s196
      %s200 = smul.addr %s199, 8
      %s201 = scalar_lea.vmem %s0, %s200
      %p202 = pneg %p50
      %p203 = pneg %p47
      %p204 = pneg %p71
      %p205 = pneg %p68
      %p206 = pneg %p92
      %p207 = pneg %p89
      %p208 = scmp.lt.s32.totalorder %s20, 0
      %s209 = scalar_select %p208, %s20, 0
      %s210 = smul.addr %s209, 8
      %s211 = scalar_lea.vmem %s3, %s210
      %p212 = pneg %p118
      %p213 = pneg %p115
      %p214 = pneg %p146
      %p215 = pneg %p143
      %p216 = scmp.lt.s32.totalorder %s19, 1
      %s217 = scalar_select %p216, %s19, 1
      %p218 = scmp.lt.s32.totalorder %s20, 0
      %s219 = scalar_select %p218, %s20, 0
      %s220 = sadd.s32 %s219, %s217
      %s221 = smul.addr %s220, 8
      %s222 = scalar_lea.vmem %s4, %s221
      %p223 = scmp.lt.s32.totalorder %s19, 1
      %s224 = scalar_select %p223, %s19, 1
      %p225 = scmp.lt.s32.totalorder %s20, 0
      %s226 = scalar_select %p225, %s20, 0
      %s227 = sadd.s32 %s226, %s224
      %s228 = smul.addr %s227, 8
      %s229 = scalar_lea.vmem %s0, %s228
      %p230 = scmp.lt.s32.totalorder %s20, 0
      %s231 = scalar_select %p230, %s20, 0
      %s232 = smul.addr %s231, 8
      %s233 = scalar_lea.vmem %s3, %s232
      %p234 = scmp.lt.s32.totalorder %s19, 1
      %s235 = scalar_select %p234, %s19, 1
      %p236 = scmp.lt.s32.totalorder %s20, 0
      %s237 = scalar_select %p236, %s20, 0
      %s238 = sadd.s32 %s237, %s235
      %s239 = smul.addr %s238, 8
      %s240 = scalar_lea.vmem %s4, %s239
      %v241 = vld [vmem:[%s229] sm:$0xff]
      %vm242 = vcmask 523264
      %v243 = vsel %vm242, %v241, 0.0
      %244 = vadd.xlane.f32.xlu0 %v243
      %v245 = vpop.xlane.xlu0 %244
      %v246 = vrcp.pop 64.0
      %v247 = vmul.f32 %v245, %v246
      %v248 = vsub.f32 %v241, %v247
      %v249 = vmul.f32 %v248, %v248
      %v250 = vsel %vm242, %v249, 0.0
      %251 = vadd.xlane.f32.xlu0 %v250
      %v252 = vpop.xlane.xlu0 %251
      %v253 = vmul.f32 %v252, %v246
      %v254 = vadd.f32 %v253, 1e-05
      %v255 = vrsqrt.pop %v254
      %v256 = vmul.f32 %v248, %v255
      %v257 = vld [vmem:[%s1] sm:$0x1]
      %v259 = vlaneseq
      %v260 = vshrl.u32 %v259, 7
      %v261 = vsub.s32 0, %v260
      %v262 = vrot.slane %v257, %v261
      %v264 = vmul.f32 %v256, %v262
      %v265 = vld [vmem:[%s2] sm:$0x1]
      %v267 = vlaneseq
      %v268 = vshrl.u32 %v267, 7
      %v269 = vsub.s32 0, %v268
      %v270 = vrot.slane %v265, %v269
      %v272 = vadd.f32 %v264, %v270
      %v273 = vld [vmem:[%s233] sm:$0xff]
      %v274 = vadd.f32 %v272, %v273
      %275 = vst.msk [vmem:[%s240] sm:$0xff] %vm242, %v274
      %p276 = scmp.lt.s32.totalorder %s19, 1
      %s277 = scalar_select %p276, %s19, 1
      %p278 = scmp.lt.s32.totalorder %s20, 0
      %s279 = scalar_select %p278, %s20, 0
      %s280 = sadd.s32 %s279, %s277
      %s281 = smul.addr %s280, 8
      %s282 = scalar_lea.vmem %s4, %s281
      // Predicated region
      $region37: #{transformer_forward.12} parent=35 // pred_check
        %p283 = pneg %p143
      $region38: #{transformer_forward.12} parent=35 // pred_check_branch
        %285 = sbr.rel (%p283) target = $region40
      $region39: #{transformer_forward.12} parent=35 // pred_region
        _
      $region40: #{transformer_forward.12} parent=35 // pred_fallthru
        _
    $region36: #{transformer_forward.12} parent=5 // pred_fallthru
      _
    %p286 = scmp.le.s32.totalorder 2, %s10
    // Predicated region
    $region41: #{transformer_forward.12} parent=5 // pred_check
      %p287 = pneg %p286
    $region42: #{transformer_forward.12} parent=5 // pred_check_branch
      %289 = sbr.rel (%p287) target = $region44
    $region43: #{transformer_forward.12} parent=5 // pred_region
      %s290 = ssub.s32 %s10, 2
      // Predicated region
      $region45: #{transformer_forward.12} parent=43 // pred_check
        %p291 = pneg %p149
      $region46: #{transformer_forward.12} parent=43 // pred_check_branch
        %293 = sbr.rel (%p291) target = $region48
      $region47: #{transformer_forward.12} parent=43 // pred_region
        %p294 = scmp.lt.s32.totalorder %s21, 1
        %s295 = scalar_select %p294, %s21, 1
        %p296 = scmp.lt.s32.totalorder %s22, 0
        %s297 = scalar_select %p296, %s22, 0
        %s298 = sadd.s32 %s297, %s295
        %s299 = smul.addr %s298, 8
        %s300 = scalar_lea.vmem %s4, %s299
      $region48: #{transformer_forward.12} parent=43 // pred_fallthru
        _
    $region44: #{transformer_forward.12} parent=5 // pred_fallthru
      _
  $region6: #{transformer_forward.12} parent=0 // loop_footer
    %s14 = sadd.s32 1, %s10
  $region7: #{transformer_forward.12} parent=0 // loop_footer_branch
    %9 = sbr.rel target = $region3
  $region8: #{transformer_forward.12} parent=0 // loop_exit
    _

// kernel: transformer_forward.13
$region0: #{transformer_forward.13}
  #allocation0 [shape = 'u32[]', space=smem, size = 0x4, offset = 0x4, fixed_abs, tag = 'smem constant byte address 0x4 - core index']
  #allocation1 [shape = 'u32[144,128]{1,0:T(1,128)}', space=vmem, size = 0x12000, scoped, tag = 'internal scratch']
  #allocation2 [shape = 'bf16[16,64]{1,0:T(8,128)(2,1)}', space=vmem, size = 0x1000, scoped, tag = 'scratch operand']
  %s0 = inlined_call_operand.vmem [shape: f32[16,64], index: 0, kind: input, shape index: {}]
  %s1 = inlined_call_operand.vmem [shape: f32[1,64], index: 1, kind: input, shape index: {}]
  %s2 = inlined_call_operand.vmem [shape: f32[1,64], index: 2, kind: input, shape index: {}]
  %s3 = inlined_call_operand.vmem [shape: bf16[64,192], index: 3, kind: input, shape index: {}]
  %s4 = inlined_call_operand.vmem [shape: f32[1,192], index: 4, kind: input, shape index: {}]
  %s5 = inlined_call_operand.vmem [shape: bf16[16,192], index: 5, kind: output, shape index: {}]
  %s6 = sld [smem:[#allocation0]]
  $region34: #{transformer_forward.13} parent=0
    _
  %s8 = ssub.s32 1, %s6
  %s9 = scalar_select 0, %s8, %s6
  // Predicated region
  $region2: #{transformer_forward.13} parent=0 // pred_check
    _
  $region3: #{transformer_forward.13} parent=0 // pred_check_branch
    %11 = sbr.rel (0) target = $region5
  $region4: #{transformer_forward.13} parent=0 // pred_region
    _
  $region5: #{transformer_forward.13} parent=0 // pred_fallthru
    _
  // Predicated region
  $region6: #{transformer_forward.13} parent=0 // pred_check
    _
  $region7: #{transformer_forward.13} parent=0 // pred_check_branch
    %13 = sbr.rel (0) target = $region9
  $region8: #{transformer_forward.13} parent=0 // pred_region
    _
  $region9: #{transformer_forward.13} parent=0 // pred_fallthru
    _
  // Predicated region
  $region10: #{transformer_forward.13} parent=0 // pred_check
    _
  $region11: #{transformer_forward.13} parent=0 // pred_check_branch
    %15 = sbr.rel (0) target = $region13
  $region12: #{transformer_forward.13} parent=0 // pred_region
    _
  $region13: #{transformer_forward.13} parent=0 // pred_fallthru
    _
  // Predicated region
  $region14: #{transformer_forward.13} parent=0 // pred_check
    _
  $region15: #{transformer_forward.13} parent=0 // pred_check_branch
    %17 = sbr.rel (0) target = $region17
  $region16: #{transformer_forward.13} parent=0 // pred_region
    _
  $region17: #{transformer_forward.13} parent=0 // pred_fallthru
    _
  // Predicated region
  $region18: #{transformer_forward.13} parent=0 // pred_check
    _
  $region19: #{transformer_forward.13} parent=0 // pred_check_branch
    %19 = sbr.rel (0) target = $region21
  $region20: #{transformer_forward.13} parent=0 // pred_region
    _
  $region21: #{transformer_forward.13} parent=0 // pred_fallthru
    _
  %p21 = scmp.eq.s32.totalorder 0, 0
  // Predicated region
  $region22: #{transformer_forward.13} parent=0 // pred_check
    %p22 = pneg %p21
  $region23: #{transformer_forward.13} parent=0 // pred_check_branch
    %24 = sbr.rel (%p22) target = $region25
  $region24: #{transformer_forward.13} parent=0 // pred_region
    %v25 = vld [vmem:[%s0] sm:$0xff]
    %v26 = vld [vmem:[%s0 + $0x8] sm:$0xff]
    %vm27 = vcmask 523264
    %v28 = vsel %vm27, %v25, 0.0
    %29 = vadd.xlane.f32.xlu0 %v28
    %v30 = vpop.xlane.xlu0 %29
    %v31 = vsel %vm27, %v26, 0.0
    %32 = vadd.xlane.f32.xlu0 %v31
    %v33 = vpop.xlane.xlu0 %32
    %v34 = vrcp.pop 64.0
    %v35 = vmul.f32 %v30, %v34
    %v36 = vmul.f32 %v33, %v34
    %v37 = vsub.f32 %v25, %v35
    %v38 = vsub.f32 %v26, %v36
    %v39 = vmul.f32 %v37, %v37
    %v40 = vmul.f32 %v38, %v38
    %v41 = vsel %vm27, %v39, 0.0
    %42 = vadd.xlane.f32.xlu0 %v41
    %v43 = vpop.xlane.xlu0 %42
    %v44 = vsel %vm27, %v40, 0.0
    %45 = vadd.xlane.f32.xlu0 %v44
    %v46 = vpop.xlane.xlu0 %45
    %v47 = vmul.f32 %v43, %v34
    %v48 = vmul.f32 %v46, %v34
    %v49 = vadd.f32 %v47, 1e-05
    %v50 = vadd.f32 %v48, 1e-05
    %v51 = vrsqrt.pop %v49
    %v52 = vrsqrt.pop %v50
    %v53 = vmul.f32 %v37, %v51
    %v54 = vmul.f32 %v38, %v52
    %v55 = vld [vmem:[%s1] sm:$0x1]
    %v57 = vlaneseq
    %v58 = vshrl.u32 %v57, 7
    %v59 = vsub.s32 0, %v58
    %v60 = vrot.slane %v55, %v59
    %v62 = vmul.f32 %v53, %v60
    %v63 = vmul.f32 %v54, %v60
    %v64 = vld [vmem:[%s2] sm:$0x1]
    %v66 = vlaneseq
    %v67 = vshrl.u32 %v66, 7
    %v68 = vsub.s32 0, %v67
    %v69 = vrot.slane %v64, %v68
    %v71 = vadd.f32 %v62, %v69
    %v72 = vadd.f32 %v63, %v69
    %v73 = vpack.c.bf16 %v72, %v71
    %v75 = vunpack.c.l.b16 %v73
    %v76 = vunpack.c.h.b16 %v73
    %v77 = vpack.c.b16 %v75, %v75
    %v78 = vpack.c.b16 %v76, %v76
    %vm81 = vcmask 519168
    %82 = vst.msk [vmem:[#allocation2] sm:$0xf] %vm81, %v77
    %83 = vst.msk [vmem:[#allocation2 + $0x4] sm:$0xf] %vm81, %v78
  $region25: #{transformer_forward.13} parent=0 // pred_fallthru
    _
  %v84 = vld [vmem:[#allocation2] sm:$0xf]
  %v85 = vld [vmem:[#allocation2 + $0x4] sm:$0xf]
  %v86 = vld [vmem:[%s3] sm:$0xff]
  %v87 = vld [vmem:[%s3 + $0x8] sm:$0xff]
  %v88 = vld [vmem:[%s3 + $0x10] sm:$0xff]
  %v89 = vld [vmem:[%s3 + $0x18] sm:$0xff]
  %v90 = vld [vmem:[%s3 + $0x20] sm:$0xff]
  %v91 = vld [vmem:[%s3 + $0x28] sm:$0xff]
  %v92 = vld [vmem:[%s3 + $0x30] sm:$0xff]
  %v93 = vld [vmem:[%s3 + $0x38] sm:$0xff]
  %v94 = vld [vmem:[%s4] sm:$0x3]
  %v96 = vlaneseq
  %v97 = vshrl.u32 %v96, 7
  %v98 = vsub.s32 0, %v97
  %v99 = vrot.slane %v94, %v98
  %v100 = vlaneseq
  %v101 = vshrl.u32 %v100, 7
  %v102 = vsub.s32 1, %v101
  %v103 = vrot.slane %v94, %v102
  %v108 = vunpack.c.l.b16 %v84
  %v109 = vunpack.c.l.b16 %v85
  %v110 = vpack.c.b16 %v109, %v108
  %v119 = vunpack.c.l.b16 %v86
  %v120 = vunpack.c.h.b16 %v86
  %v121 = vunpack.c.l.b16 %v87
  %v122 = vunpack.c.h.b16 %v87
  %v123 = vunpack.c.l.b16 %v88
  %v124 = vunpack.c.h.b16 %v88
  %v125 = vunpack.c.l.b16 %v89
  %v126 = vunpack.c.h.b16 %v89
  %v127 = vunpack.c.l.b16 %v90
  %v128 = vunpack.c.h.b16 %v90
  %v129 = vunpack.c.l.b16 %v91
  %v130 = vunpack.c.h.b16 %v91
  %v131 = vunpack.c.l.b16 %v92
  %v132 = vunpack.c.h.b16 %v92
  %v133 = vunpack.c.l.b16 %v93
  %v134 = vunpack.c.h.b16 %v93
  %v135 = vpack.c.b16 %v121, %v119
  %v136 = vpack.c.b16 %v122, %v120
  %v137 = vpack.c.b16 %v125, %v123
  %v138 = vpack.c.b16 %v126, %v124
  %v139 = vpack.c.b16 %v129, %v127
  %v140 = vpack.c.b16 %v130, %v128
  %v141 = vpack.c.b16 %v133, %v131
  %v142 = vpack.c.b16 %v134, %v132
  %vm151 = vcmask 523264
  %v153 = vsel %vm151, %v110, 0
  %155 = vmatprep.subr.bf16.mxu0 0
  %156 = vmatpush1.bf16.msra.mxu0 0
  %157 = vmatprep.subr.bf16.mxu0 0
  %158 = vmatpush1.bf16.msra.mxu0 0
  %159 = vmatprep.subr.bf16.mxu0 0
  %160 = vmatpush1.bf16.msra.mxu0 0
  %161 = vmatprep.subr.bf16.mxu0 0
  %162 = vmatpush1.bf16.msra.mxu0 0
  %163 = vmatprep.subr.bf16.mxu0 %v142
  %164 = vmatpush1.bf16.msra.mxu0 %v141
  %165 = vmatprep.subr.bf16.mxu0 %v140
  %166 = vmatpush1.bf16.msra.mxu0 %v139
  %167 = vmatprep.subr.bf16.mxu0 %v138
  %168 = vmatpush1.bf16.msra.mxu0 %v137
  %169 = vmatprep.subr.bf16.mxu0 %v136
  %170 = vmatpush1.bf16.msra.mxu0 %v135
  %171 = vmatprep.subr.bf16.mxu0 0
  %172 = vmatpush2.bf16.msra.mxu0 0
  %173 = vmatprep.subr.bf16.mxu0 0
  %174 = vmatpush2.bf16.msra.mxu0 0
  %175 = vmatprep.subr.bf16.mxu0 0
  %176 = vmatpush2.bf16.msra.mxu0 0
  %177 = vmatprep.subr.bf16.mxu0 0
  %178 = vmatpush2.bf16.msra.mxu0 0
  %179 = vmatprep.subr.bf16.mxu0 0
  %180 = vmatpush2.bf16.msra.mxu0 0
  %181 = vmatprep.subr.bf16.mxu0 0
  %182 = vmatpush2.bf16.msra.mxu0 0
  %183 = vmatprep.subr.bf16.mxu0 0
  %184 = vmatpush2.bf16.msra.mxu0 0
  %185 = vmatprep.subr.bf16.mxu0 0
  %186 = vmatpush2.bf16.msra.mxu0 0
  %187 = vmatprep.mubr.bf16.mxu0 0
  %188 = vmatmul.mubr.bf16.gmra.mxu0 %v153
  %v189 = vpop.f32.mrf.mxu0
  %v190 = vadd.f32 %v99, %v189
  %v191 = vpop.f32.mrf.mxu0
  %v192 = vadd.f32 %v103, %v191
  %v193 = vpop.f32.mrf.mxu0
  %v194 = vadd.f32 %v99, %v193
  %v195 = vpop.f32.mrf.mxu0
  %v196 = vadd.f32 %v103, %v195
  %197 = vdwg.mxu0
  %v198 = vpack.c.bf16 %v194, %v190
  %v199 = vpack.c.bf16 %v196, %v192
  %v202 = vunpack.c.l.b16 %v198
  %v203 = vunpack.c.l.b16 %v199
  %v204 = vunpack.c.h.b16 %v198
  %v205 = vunpack.c.h.b16 %v199
  %v206 = vpack.c.b16 %v203, %v202
  %v207 = vpack.c.b16 %v205, %v204
  %vm210 = vcmask 1043456
  %vm211 = vcmask 523268
  %vm212 = vmor %vm211, %vm210
  %213 = vst.msk [vmem:[%s5] sm:$0xff] %vm212, %v206
  %214 = vst.msk [vmem:[%s5 + $0x8] sm:$0xff] %vm212, %v207
  // Predicated region
  $region26: #{transformer_forward.13} parent=0 // pred_check
    _
  $region27: #{transformer_forward.13} parent=0 // pred_check_branch
    %216 = sbr.rel (0) target = $region29
  $region28: #{transformer_forward.13} parent=0 // pred_region
    _
  $region29: #{transformer_forward.13} parent=0 // pred_fallthru
    _
  // Predicated region
  $region30: #{transformer_forward.13} parent=0 // pred_check
    _
  $region31: #{transformer_forward.13} parent=0 // pred_check_branch
    %218 = sbr.rel (0) target = $region33
  $region32: #{transformer_forward.13} parent=0 // pred_region
    _
  $region33: #{transformer_forward.13} parent=0 // pred_fallthru
    _

// kernel: transformer_forward.14
$region0: #{transformer_forward.14}
  #allocation0 [shape = 'u32[]', space=smem, size = 0x4, offset = 0x4, fixed_abs, tag = 'smem constant byte address 0x4 - core index']
  #allocation1 [shape = 'u32[144,128]{1,0:T(1,128)}', space=vmem, size = 0x12000, scoped, tag = 'internal scratch']
  %s0 = inlined_call_operand.vmem [shape: bf16[16,192], index: 0, kind: input, shape index: {}]
  %s1 = inlined_call_operand.vmem [shape: bf16[16,64], index: 1, kind: output, shape index: {}]
  %s2 = sld [smem:[#allocation0]]
  $region37: #{transformer_forward.14} parent=0
    _
  %s4 = ssub.s32 1, %s2
  %s5 = scalar_select 0, %s4, %s2
  loop: start=0, step=1, limit=4
  $region2: #{transformer_forward.14} parent=0 // loop_pre_header
    _
  $region3: #{transformer_forward.14} parent=0 // loop_header
    %s7 = sphi 0, %s11
    %p8 = scmp.ge.s32.totalorder %s7, 4
    %s14 = sphi 0, %s26
    %s15 = sphi 0, %s22
    %s16 = sphi 0, %s14
    %s17 = sphi 0, %s15
    %s18 = sphi 0, %s16
    %s19 = sphi 0, %s17
    %s29 = sphi 0, %s31
    %s32 = sphi 0, %s29
    %s33 = sphi 0, %s32
    %s49 = sphi 0, %s33
    %s57 = sphi 0, %s59
    %s60 = sphi 0, %s57
    %s61 = sphi 0, %s60
    %s77 = sphi 0, %s61
  $region4: #{transformer_forward.14} parent=0 // loop_header_branch
    %10 = sbr.rel (%p8) target = $region8
  $region5: #{transformer_forward.14} parent=0 // loop_body
    %s12 = ssub.s32 %s7, 1
    %s13 = ssub.s32 %s7, 2
    %s20 = sadd.s32 1, %s15
    %p21 = scmp.ge.s32.totalorder %s20, 1
    %s22 = scalar_select %p21, 0, %s20
    %s23 = sadd.s32 1, %s14
    %s24 = scalar_select %p21, %s23, %s14
    %p25 = scmp.ge.s32.totalorder %s24, 2
    %s26 = scalar_select %p25, 0, %s24
    %s27 = ssub.s32 %s14, %s26
    %p28 = scmp.eq.s32.totalorder %s27, 0
    %s30 = sadd.s32 %s29, 1
    %s31 = scalar_select %p28, %s29, %s30
    %p34 = pneg %p28
    %p35 = scmp.eq.s32.totalorder %s7, 1
    %p36 = por %p34, %p35
    %p37 = scmp.ne.s32.totalorder %s29, %s32
    %p38 = scmp.eq.s32.totalorder %s7, 0
    %p39 = por %p37, %p38
    %p40 = scmp.ne.s32.totalorder %s29, %s32
    %p41 = scmp.eq.s32.totalorder %s12, 1
    %p42 = por %p40, %p41
    %p43 = scmp.ne.s32.totalorder %s32, %s33
    %p44 = scmp.eq.s32.totalorder %s12, 0
    %p45 = por %p43, %p44
    %p46 = scmp.ne.s32.totalorder %s32, %s33
    %p47 = scmp.eq.s32.totalorder %s13, 1
    %p48 = por %p46, %p47
    %p50 = scmp.ne.s32.totalorder %s33, %s49
    %p51 = scmp.eq.s32.totalorder %s13, 0
    %p52 = por %p50, %p51
    %s53 = ssub.s32 %s14, %s26
    %s54 = ssub.s32 %s15, %s22
    %s55 = sor.u32 %s53, %s54
    %p56 = scmp.eq.s32.totalorder %s55, 0
    %s58 = sadd.s32 %s57, 1
    %s59 = scalar_select %p56, %s57, %s58
    %p62 = pneg %p56
    %p63 = scmp.eq.s32.totalorder %s7, 1
    %p64 = por %p62, %p63
    %p65 = scmp.ne.s32.totalorder %s57, %s60
    %p66 = scmp.eq.s32.totalorder %s7, 0
    %p67 = por %p65, %p66
    %p68 = scmp.ne.s32.totalorder %s57, %s60
    %p69 = scmp.eq.s32.totalorder %s12, 1
    %p70 = por %p68, %p69
    %p71 = scmp.ne.s32.totalorder %s60, %s61
    %p72 = scmp.eq.s32.totalorder %s12, 0
    %p73 = por %p71, %p72
    %p74 = scmp.ne.s32.totalorder %s60, %s61
    %p75 = scmp.eq.s32.totalorder %s13, 1
    %p76 = por %p74, %p75
    %p78 = scmp.ne.s32.totalorder %s61, %s77
    %p79 = scmp.eq.s32.totalorder %s13, 0
    %p80 = por %p78, %p79
    %p81 = scmp.le.s32.totalorder 1, %s7
    %p82 = scmp.lt.s32.totalorder %s7, 3
    %p83 = pnand %p81, %p82
    %p84 = pneg %p83
    // Predicated region
    $region9: #{transformer_forward.14} parent=5 // pred_check
      _
    $region10: #{transformer_forward.14} parent=5 // pred_check_branch
      %86 = sbr.rel (%p83) target = $region12
    $region11: #{transformer_forward.14} parent=5 // pred_region
      %s87 = ssub.s32 %s7, 1
    $region12: #{transformer_forward.14} parent=5 // pred_fallthru
      _
    %p88 = scmp.lt.s32.totalorder %s7, 2
    // Predicated region
    $region13: #{transformer_forward.14} parent=5 // pred_check
      %p89 = pneg %p88
    $region14: #{transformer_forward.14} parent=5 // pred_check_branch
      %91 = sbr.rel (%p89) target = $region16
    $region15: #{transformer_forward.14} parent=5 // pred_region
      // Predicated region
      $region17: #{transformer_forward.14} parent=15 // pred_check
        %p92 = pneg %p39
      $region18: #{transformer_forward.14} parent=15 // pred_check_branch
        %94 = sbr.rel (%p92) target = $region20
      $region19: #{transformer_forward.14} parent=15 // pred_region
        %p95 = scmp.lt.s32.totalorder %s14, 1
        %s96 = scalar_select %p95, %s14, 1
        %s97 = smul.addr %s96, 2
        %s98 = smul.addr %s97, 4
        %s99 = scalar_lea.vmem %s0, %s98
      $region20: #{transformer_forward.14} parent=15 // pred_fallthru
        _
    $region16: #{transformer_forward.14} parent=5 // pred_fallthru
      _
    %p100 = scmp.le.s32.totalorder 1, %s7
    %p101 = scmp.lt.s32.totalorder %s7, 3
    %p102 = pnand %p100, %p101
    %p103 = pneg %p102
    // Predicated region
    $region21: #{transformer_forward.14} parent=5 // pred_check
      _
    $region22: #{transformer_forward.14} parent=5 // pred_check_branch
      %105 = sbr.rel (%p102) target = $region24
    $region23: #{transformer_forward.14} parent=5 // pred_region
      %s106 = ssub.s32 %s7, 1
      %p107 = scmp.lt.s32.totalorder %s16, 1
      %s108 = scalar_select %p107, %s16, 1
      %s109 = smul.addr %s108, 2
      %s110 = smul.addr %s109, 4
      %s111 = scalar_lea.vmem %s0, %s110
      %p112 = pneg %p45
      %p113 = pneg %p42
      %p114 = pneg %p73
      %p115 = pneg %p70
      %p116 = scmp.lt.s32.totalorder %s16, 1
      %s117 = scalar_select %p116, %s16, 1
      %p118 = scmp.lt.s32.totalorder %s17, 0
      %s119 = scalar_select %p118, %s17, 0
      %s120 = sadd.s32 %s119, %s117
      %s121 = smul.addr %s120, 4
      %s122 = scalar_lea.vmem %s1, %s121
      %p123 = scmp.lt.s32.totalorder %s16, 1
      %s124 = scalar_select %p123, %s16, 1
      %s125 = smul.addr %s124, 2
      %s126 = smul.addr %s125, 4
      %s127 = scalar_lea.vmem %s0, %s126
      %p128 = scmp.lt.s32.totalorder %s16, 1
      %s129 = scalar_select %p128, %s16, 1
      %p130 = scmp.lt.s32.totalorder %s17, 0
      %s131 = scalar_select %p130, %s17, 0
      %s132 = sadd.s32 %s131, %s129
      %s133 = smul.addr %s132, 4
      %s134 = scalar_lea.vmem %s1, %s133
      %v136 = vld [vmem:[%s127] sm:$0xf]
      %v137 = vunpack.c.l.bf16 %v136
      %v138 = vmul.f32 %v137, 0.25
      %v139 = vpack.c.bf16 %v138, %v138
      %v140 = vld [vmem:[%s127 + $0x4] sm:$0xf]
      %v141 = vlaneseq
      %v142 = vshrl.u32 %v141, 7
      %v143 = vlaneseq
      %v144 = vand.u32 %v143, 127
      %vm145 = vcmp.le.s32.totalorder %v144, %v142
      %v147 = vunpack.c.l.b16 %v136
      %v148 = vpack.c.b16 %v147, %v147
      %149 = vrot.lane.b32.xlu0 %v148, 64
      %v150 = vpop.permute.xlu0 %149
      %vm151 = vcmask 130048
      %v153 = vsel %vm151, %v139, 0
      %v156 = vsel %vm151, %v150, 0
      %158 = vmatprep.subr.bf16.mxu0 0
      %159 = vmatpush1.bf16.xpose.msra.mxu0 0
      %160 = vmatprep.subr.bf16.mxu0 0
      %161 = vmatpush1.bf16.xpose.msra.mxu0 0
      %162 = vmatprep.subr.bf16.mxu0 0
      %163 = vmatpush1.bf16.xpose.msra.mxu0 0
      %164 = vmatprep.subr.bf16.mxu0 0
      %165 = vmatpush1.bf16.xpose.msra.mxu0 0
      %166 = vmatprep.subr.bf16.mxu0 0
      %167 = vmatpush1.bf16.xpose.msra.mxu0 0
      %168 = vmatprep.subr.bf16.mxu0 0
      %169 = vmatpush1.bf16.xpose.msra.mxu0 0
      %170 = vmatprep.subr.bf16.mxu0 0
      %171 = vmatpush1.bf16.xpose.msra.mxu0 0
      %172 = vmatprep.subr.bf16.mxu0 0
      %173 = vmatpush1.bf16.xpose.msra.mxu0 %v156
      %174 = vmatprep.subr.bf16.mxu0 0
      %175 = vmatpush2.bf16.xpose.msra.mxu0 0
      %176 = vmatprep.subr.bf16.mxu0 0
      %177 = vmatpush2.bf16.xpose.msra.mxu0 0
      %178 = vmatprep.subr.bf16.mxu0 0
      %179 = vmatpush2.bf16.xpose.msra.mxu0 0
      %180 = vmatprep.subr.bf16.mxu0 0
      %181 = vmatpush2.bf16.xpose.msra.mxu0 0
      %182 = vmatprep.subr.bf16.mxu0 0
      %183 = vmatpush2.bf16.xpose.msra.mxu0 0
      %184 = vmatprep.subr.bf16.mxu0 0
      %185 = vmatpush2.bf16.xpose.msra.mxu0 0
      %186 = vmatprep.subr.bf16.mxu0 0
      %187 = vmatpush2.bf16.xpose.msra.mxu0 0
      %188 = vmatprep.subr.bf16.mxu0 0
      %189 = vmatpush2.bf16.xpose.msra.mxu0 0
      %190 = vmatprep.mubr.bf16.mxu0 0
      %191 = vmatmul.mubr.bf16.gmra.mxu0 %v153
      %v192 = vpop.f32.mrf.mxu0
      %v193 = vadd.f32 0.0, %v192
      %v194 = vpop.f32.mrf.mxu0
      %v195 = vpop.f32.mrf.mxu0
      %v196 = vpop.f32.mrf.mxu0
      %197 = vdwg.mxu0
      %v198 = vsel %vm145, %v193, -1e+30
      %vm199 = vcmask 64512
      %v200 = vsel %vm199, %v198, -inf
      %201 = vmax.xlane.f32.xlu0 %v200
      %v202 = vpop.xlane.xlu0 %201
      %v203 = vsub.f32 %v198, %v202
      %v204 = vmul.f32 %v203, 1.442695
      %v205 = vpow.pop %v204
      %v206 = vsel %vm199, %v205, 0.0
      %207 = vadd.xlane.f32.xlu0 %v206
      %v208 = vpop.xlane.xlu0 %207
      %v209 = vpack.c.bf16 %v205, %v205
      %v211 = vsel %vm199, %v209, 0
      %vm213 = vcmask 1043456
      %v215 = vsel %vm213, %v140, 0
      %217 = vmatprep.subr.bf16.mxu0 0
      %218 = vmatpush1.bf16.msra.mxu0 0
      %219 = vmatprep.subr.bf16.mxu0 0
      %220 = vmatpush1.bf16.msra.mxu0 0
      %221 = vmatprep.subr.bf16.mxu0 0
      %222 = vmatpush1.bf16.msra.mxu0 0
      %223 = vmatprep.subr.bf16.mxu0 0
      %224 = vmatpush1.bf16.msra.mxu0 0
      %225 = vmatprep.subr.bf16.mxu0 0
      %226 = vmatpush1.bf16.msra.mxu0 0
      %227 = vmatprep.subr.bf16.mxu0 0
      %228 = vmatpush1.bf16.msra.mxu0 0
      %229 = vmatprep.subr.bf16.mxu0 0
      %230 = vmatpush1.bf16.msra.mxu0 0
      %231 = vmatprep.subr.bf16.mxu0 0
      %232 = vmatpush1.bf16.msra.mxu0 %v215
      %233 = vmatprep.subr.bf16.mxu0 0
      %234 = vmatpush2.bf16.msra.mxu0 0
      %235 = vmatprep.subr.bf16.mxu0 0
      %236 = vmatpush2.bf16.msra.mxu0 0
      %237 = vmatprep.subr.bf16.mxu0 0
      %238 = vmatpush2.bf16.msra.mxu0 0
      %239 = vmatprep.subr.bf16.mxu0 0
      %240 = vmatpush2.bf16.msra.mxu0 0
      %241 = vmatprep.subr.bf16.mxu0 0
      %242 = vmatpush2.bf16.msra.mxu0 0
      %243 = vmatprep.subr.bf16.mxu0 0
      %244 = vmatpush2.bf16.msra.mxu0 0
      %245 = vmatprep.subr.bf16.mxu0 0
      %246 = vmatpush2.bf16.msra.mxu0 0
      %247 = vmatprep.subr.bf16.mxu0 0
      %248 = vmatpush2.bf16.msra.mxu0 0
      %249 = vmatprep.mubr.bf16.mxu0 0
      %250 = vmatmul.mubr.bf16.gmra.mxu0 %v211
      %v251 = vpop.f32.mrf.mxu0
      %v252 = vadd.f32 0.0, %v251
      %v253 = vpop.f32.mrf.mxu0
      %v254 = vpop.f32.mrf.mxu0
      %v255 = vpop.f32.mrf.mxu0
      %256 = vdwg.mxu0
      %v257 = vrcp.pop %v208
      %v258 = vmul.f32 %v252, %v257
      %v259 = vpack.c.bf16 %v258, %v258
      %vm260 = vcmask 125952
      %261 = vst.msk [vmem:[%s134] sm:$0xf] %vm260, %v259
      %263 = vrot.lane.b32.xlu0 %v139, 112
      %v264 = vpop.permute.xlu0 %263
      %265 = vrot.lane.b32.xlu0 %v148, 48
      %v266 = vpop.permute.xlu0 %265
      %v268 = vsel %vm151, %v264, 0
      %v271 = vsel %vm151, %v266, 0
      %273 = vmatprep.subr.bf16.mxu0 0
      %274 = vmatpush1.bf16.xpose.msra.mxu0 0
      %275 = vmatprep.subr.bf16.mxu0 0
      %276 = vmatpush1.bf16.xpose.msra.mxu0 0
      %277 = vmatprep.subr.bf16.mxu0 0
      %278 = vmatpush1.bf16.xpose.msra.mxu0 0
      %279 = vmatprep.subr.bf16.mxu0 0
      %280 = vmatpush1.bf16.xpose.msra.mxu0 0
      %281 = vmatprep.subr.bf16.mxu0 0
      %282 = vmatpush1.bf16.xpose.msra.mxu0 0
      %283 = vmatprep.subr.bf16.mxu0 0
      %284 = vmatpush1.bf16.xpose.msra.mxu0 0
      %285 = vmatprep.subr.bf16.mxu0 0
      %286 = vmatpush1.bf16.xpose.msra.mxu0 0
      %287 = vmatprep.subr.bf16.mxu0 0
      %288 = vmatpush1.bf16.xpose.msra.mxu0 %v271
      %289 = vmatprep.subr.bf16.mxu0 0
      %290 = vmatpush2.bf16.xpose.msra.mxu0 0
      %291 = vmatprep.subr.bf16.mxu0 0
      %292 = vmatpush2.bf16.xpose.msra.mxu0 0
      %293 = vmatprep.subr.bf16.mxu0 0
      %294 = vmatpush2.bf16.xpose.msra.mxu0 0
      %295 = vmatprep.subr.bf16.mxu0 0
      %296 = vmatpush2.bf16.xpose.msra.mxu0 0
      %297 = vmatprep.subr.bf16.mxu0 0
      %298 = vmatpush2.bf16.xpose.msra.mxu0 0
      %299 = vmatprep.subr.bf16.mxu0 0
      %300 = vmatpush2.bf16.xpose.msra.mxu0 0
      %301 = vmatprep.subr.bf16.mxu0 0
      %302 = vmatpush2.bf16.xpose.msra.mxu0 0
      %303 = vmatprep.subr.bf16.mxu0 0
      %304 = vmatpush2.bf16.xpose.msra.mxu0 0
      %305 = vmatprep.mubr.bf16.mxu0 0
      %306 = vmatmul.mubr.bf16.gmra.mxu0 %v268
      %v307 = vpop.f32.mrf.mxu0
      %v308 = vadd.f32 0.0, %v307
      %v309 = vpop.f32.mrf.mxu0
      %v310 = vpop.f32.mrf.mxu0
      %v311 = vpop.f32.mrf.mxu0
      %312 = vdwg.mxu0
      %v313 = vsel %vm145, %v308, -1e+30
      %v314 = vsel %vm199, %v313, -inf
      %315 = vmax.xlane.f32.xlu0 %v314
      %v316 = vpop.xlane.xlu0 %315
      %v317 = vsub.f32 %v313, %v316
      %v318 = vmul.f32 %v317, 1.442695
      %v319 = vpow.pop %v318
      %v320 = vsel %vm199, %v319, 0.0
      %321 = vadd.xlane.f32.xlu0 %v320
      %v322 = vpop.xlane.xlu0 %321
      %v323 = vpack.c.bf16 %v319, %v319
      %v325 = vunpack.c.l.b16 %v140
      %v326 = vpack.c.b16 %v325, %v325
      %327 = vrot.lane.b32.xlu0 %v326, 112
      %v328 = vpop.permute.xlu0 %327
      %v330 = vsel %vm199, %v323, 0
      %v333 = vsel %vm213, %v328, 0
      %335 = vmatprep.subr.bf16.mxu0 0
      %336 = vmatpush1.bf16.msra.mxu0 0
      %337 = vmatprep.subr.bf16.mxu0 0
      %338 = vmatpush1.bf16.msra.mxu0 0
      %339 = vmatprep.subr.bf16.mxu0 0
      %340 = vmatpush1.bf16.msra.mxu0 0
      %341 = vmatprep.subr.bf16.mxu0 0
      %342 = vmatpush1.bf16.msra.mxu0 0
      %343 = vmatprep.subr.bf16.mxu0 0
      %344 = vmatpush1.bf16.msra.mxu0 0
      %345 = vmatprep.subr.bf16.mxu0 0
      %346 = vmatpush1.bf16.msra.mxu0 0
      %347 = vmatprep.subr.bf16.mxu0 0
      %348 = vmatpush1.bf16.msra.mxu0 0
      %349 = vmatprep.subr.bf16.mxu0 0
      %350 = vmatpush1.bf16.msra.mxu0 %v333
      %351 = vmatprep.subr.bf16.mxu0 0
      %352 = vmatpush2.bf16.msra.mxu0 0
      %353 = vmatprep.subr.bf16.mxu0 0
      %354 = vmatpush2.bf16.msra.mxu0 0
      %355 = vmatprep.subr.bf16.mxu0 0
      %356 = vmatpush2.bf16.msra.mxu0 0
      %357 = vmatprep.subr.bf16.mxu0 0
      %358 = vmatpush2.bf16.msra.mxu0 0
      %359 = vmatprep.subr.bf16.mxu0 0
      %360 = vmatpush2.bf16.msra.mxu0 0
      %361 = vmatprep.subr.bf16.mxu0 0
      %362 = vmatpush2.bf16.msra.mxu0 0
      %363 = vmatprep.subr.bf16.mxu0 0
      %364 = vmatpush2.bf16.msra.mxu0 0
      %365 = vmatprep.subr.bf16.mxu0 0
      %366 = vmatpush2.bf16.msra.mxu0 0
      %367 = vmatprep.mubr.bf16.mxu0 0
      %368 = vmatmul.mubr.bf16.gmra.mxu0 %v330
      %v369 = vpop.f32.mrf.mxu0
      %v370 = vadd.f32 0.0, %v369
      %v371 = vpop.f32.mrf.mxu0
      %v372 = vpop.f32.mrf.mxu0
      %v373 = vpop.f32.mrf.mxu0
      %374 = vdwg.mxu0
      %v375 = vrcp.pop %v322
      %v376 = vmul.f32 %v370, %v375
      %v377 = vpack.c.bf16 %v376, %v376
      %v379 = vunpack.c.l.b16 %v377
      %v380 = vpack.c.b16 %v379, %v379
      %381 = vrot.lane.b32.xlu0 %v380, 16
      %v382 = vpop.permute.xlu0 %381
      %vm384 = vcmask 257152
      %385 = vst.msk [vmem:[%s134] sm:$0xf] %vm384, %v382
      %386 = vrot.lane.b32.xlu0 %v139, 96
      %v387 = vpop.permute.xlu0 %386
      %388 = vrot.lane.b32.xlu0 %v148, 32
      %v389 = vpop.permute.xlu0 %388
      %v391 = vsel %vm151, %v387, 0
      %v394 = vsel %vm151, %v389, 0
      %396 = vmatprep.subr.bf16.mxu0 0
      %397 = vmatpush1.bf16.xpose.msra.mxu0 0
      %398 = vmatprep.subr.bf16.mxu0 0
      %399 = vmatpush1.bf16.xpose.msra.mxu0 0
      %400 = vmatprep.subr.bf16.mxu0 0
      %401 = vmatpush1.bf16.xpose.msra.mxu0 0
      %402 = vmatprep.subr.bf16.mxu0 0
      %403 = vmatpush1.bf16.xpose.msra.mxu0 0
      %404 = vmatprep.subr.bf16.mxu0 0
      %405 = vmatpush1.bf16.xpose.msra.mxu0 0
      %406 = vmatprep.subr.bf16.mxu0 0
      %407 = vmatpush1.bf16.xpose.msra.mxu0 0
      %408 = vmatprep.subr.bf16.mxu0 0
      %409 = vmatpush1.bf16.xpose.msra.mxu0 0
      %410 = vmatprep.subr.bf16.mxu0 0
      %411 = vmatpush1.bf16.xpose.msra.mxu0 %v394
      %412 = vmatprep.subr.bf16.mxu0 0
      %413 = vmatpush2.bf16.xpose.msra.mxu0 0
      %414 = vmatprep.subr.bf16.mxu0 0
      %415 = vmatpush2.bf16.xpose.msra.mxu0 0
      %416 = vmatprep.subr.bf16.mxu0 0
      %417 = vmatpush2.bf16.xpose.msra.mxu0 0
      %418 = vmatprep.subr.bf16.mxu0 0
      %419 = vmatpush2.bf16.xpose.msra.mxu0 0
      %420 = vmatprep.subr.bf16.mxu0 0
      %421 = vmatpush2.bf16.xpose.msra.mxu0 0
      %422 = vmatprep.subr.bf16.mxu0 0
      %423 = vmatpush2.bf16.xpose.msra.mxu0 0
      %424 = vmatprep.subr.bf16.mxu0 0
      %425 = vmatpush2.bf16.xpose.msra.mxu0 0
      %426 = vmatprep.subr.bf16.mxu0 0
      %427 = vmatpush2.bf16.xpose.msra.mxu0 0
      %428 = vmatprep.mubr.bf16.mxu0 0
      %429 = vmatmul.mubr.bf16.gmra.mxu0 %v391
      %v430 = vpop.f32.mrf.mxu0
      %v431 = vadd.f32 0.0, %v430
      %v432 = vpop.f32.mrf.mxu0
      %v433 = vpop.f32.mrf.mxu0
      %v434 = vpop.f32.mrf.mxu0
      %435 = vdwg.mxu0
      %v436 = vsel %vm145, %v431, -1e+30
      %v437 = vsel %vm199, %v436, -inf
      %438 = vmax.xlane.f32.xlu0 %v437
      %v439 = vpop.xlane.xlu0 %438
      %v440 = vsub.f32 %v436, %v439
      %v441 = vmul.f32 %v440, 1.442695
      %v442 = vpow.pop %v441
      %v443 = vsel %vm199, %v442, 0.0
      %444 = vadd.xlane.f32.xlu0 %v443
      %v445 = vpop.xlane.xlu0 %444
      %v446 = vpack.c.bf16 %v442, %v442
      %447 = vrot.lane.b32.xlu0 %v326, 96
      %v448 = vpop.permute.xlu0 %447
      %v450 = vsel %vm199, %v446, 0
      %v453 = vsel %vm213, %v448, 0
      %455 = vmatprep.subr.bf16.mxu0 0
      %456 = vmatpush1.bf16.msra.mxu0 0
      %457 = vmatprep.subr.bf16.mxu0 0
      %458 = vmatpush1.bf16.msra.mxu0 0
      %459 = vmatprep.subr.bf16.mxu0 0
      %460 = vmatpush1.bf16.msra.mxu0 0
      %461 = vmatprep.subr.bf16.mxu0 0
      %462 = vmatpush1.bf16.msra.mxu0 0
      %463 = vmatprep.subr.bf16.mxu0 0
      %464 = vmatpush1.bf16.msra.mxu0 0
      %465 = vmatprep.subr.bf16.mxu0 0
      %466 = vmatpush1.bf16.msra.mxu0 0
      %467 = vmatprep.subr.bf16.mxu0 0
      %468 = vmatpush1.bf16.msra.mxu0 0
      %469 = vmatprep.subr.bf16.mxu0 0
      %470 = vmatpush1.bf16.msra.mxu0 %v453
      %471 = vmatprep.subr.bf16.mxu0 0
      %472 = vmatpush2.bf16.msra.mxu0 0
      %473 = vmatprep.subr.bf16.mxu0 0
      %474 = vmatpush2.bf16.msra.mxu0 0
      %475 = vmatprep.subr.bf16.mxu0 0
      %476 = vmatpush2.bf16.msra.mxu0 0
      %477 = vmatprep.subr.bf16.mxu0 0
      %478 = vmatpush2.bf16.msra.mxu0 0
      %479 = vmatprep.subr.bf16.mxu0 0
      %480 = vmatpush2.bf16.msra.mxu0 0
      %481 = vmatprep.subr.bf16.mxu0 0
      %482 = vmatpush2.bf16.msra.mxu0 0
      %483 = vmatprep.subr.bf16.mxu0 0
      %484 = vmatpush2.bf16.msra.mxu0 0
      %485 = vmatprep.subr.bf16.mxu0 0
      %486 = vmatpush2.bf16.msra.mxu0 0
      %487 = vmatprep.mubr.bf16.mxu0 0
      %488 = vmatmul.mubr.bf16.gmra.mxu0 %v450
      %v489 = vpop.f32.mrf.mxu0
      %v490 = vadd.f32 0.0, %v489
      %v491 = vpop.f32.mrf.mxu0
      %v492 = vpop.f32.mrf.mxu0
      %v493 = vpop.f32.mrf.mxu0
      %494 = vdwg.mxu0
      %v495 = vrcp.pop %v445
      %v496 = vmul.f32 %v490, %v495
      %v497 = vpack.c.bf16 %v496, %v496
      %v499 = vunpack.c.l.b16 %v497
      %v500 = vpack.c.b16 %v499, %v499
      %501 = vrot.lane.b32.xlu0 %v500, 32
      %v502 = vpop.permute.xlu0 %501
      %vm504 = vcmask 388352
      %505 = vst.msk [vmem:[%s134] sm:$0xf] %vm504, %v502
      %506 = vrot.lane.b32.xlu0 %v139, 80
      %v507 = vpop.permute.xlu0 %506
      %508 = vrot.lane.b32.xlu0 %v148, 16
      %v509 = vpop.permute.xlu0 %508
      %v511 = vsel %vm151, %v507, 0
      %v514 = vsel %vm151, %v509, 0
      %516 = vmatprep.subr.bf16.mxu0 0
      %517 = vmatpush1.bf16.xpose.msra.mxu0 0
      %518 = vmatprep.subr.bf16.mxu0 0
      %519 = vmatpush1.bf16.xpose.msra.mxu0 0
      %520 = vmatprep.subr.bf16.mxu0 0
      %521 = vmatpush1.bf16.xpose.msra.mxu0 0
      %522 = vmatprep.subr.bf16.mxu0 0
      %523 = vmatpush1.bf16.xpose.msra.mxu0 0
      %524 = vmatprep.subr.bf16.mxu0 0
      %525 = vmatpush1.bf16.xpose.msra.mxu0 0
      %526 = vmatprep.subr.bf16.mxu0 0
      %527 = vmatpush1.bf16.xpose.msra.mxu0 0
      %528 = vmatprep.subr.bf16.mxu0 0
      %529 = vmatpush1.bf16.xpose.msra.mxu0 0
      %530 = vmatprep.subr.bf16.mxu0 0
      %531 = vmatpush1.bf16.xpose.msra.mxu0 %v514
      %532 = vmatprep.subr.bf16.mxu0 0
      %533 = vmatpush2.bf16.xpose.msra.mxu0 0
      %534 = vmatprep.subr.bf16.mxu0 0
      %535 = vmatpush2.bf16.xpose.msra.mxu0 0
      %536 = vmatprep.subr.bf16.mxu0 0
      %537 = vmatpush2.bf16.xpose.msra.mxu0 0
      %538 = vmatprep.subr.bf16.mxu0 0
      %539 = vmatpush2.bf16.xpose.msra.mxu0 0
      %540 = vmatprep.subr.bf16.mxu0 0
      %541 = vmatpush2.bf16.xpose.msra.mxu0 0
      %542 = vmatprep.subr.bf16.mxu0 0
      %543 = vmatpush2.bf16.xpose.msra.mxu0 0
      %544 = vmatprep.subr.bf16.mxu0 0
      %545 = vmatpush2.bf16.xpose.msra.mxu0 0
      %546 = vmatprep.subr.bf16.mxu0 0
      %547 = vmatpush2.bf16.xpose.msra.mxu0 0
      %548 = vmatprep.mubr.bf16.mxu0 0
      %549 = vmatmul.mubr.bf16.gmra.mxu0 %v511
      %v550 = vpop.f32.mrf.mxu0
      %v551 = vadd.f32 0.0, %v550
      %v552 = vpop.f32.mrf.mxu0
      %v553 = vpop.f32.mrf.mxu0
      %v554 = vpop.f32.mrf.mxu0
      %555 = vdwg.mxu0
      %v556 = vsel %vm145, %v551, -1e+30
      %v557 = vsel %vm199, %v556, -inf
      %558 = vmax.xlane.f32.xlu0 %v557
      %v559 = vpop.xlane.xlu0 %558
      %v560 = vsub.f32 %v556, %v559
      %v561 = vmul.f32 %v560, 1.442695
      %v562 = vpow.pop %v561
      %v563 = vsel %vm199, %v562, 0.0
      %564 = vadd.xlane.f32.xlu0 %v563
      %v565 = vpop.xlane.xlu0 %564
      %v566 = vpack.c.bf16 %v562, %v562
      %567 = vrot.lane.b32.xlu0 %v326, 80
      %v568 = vpop.permute.xlu0 %567
      %v570 = vsel %vm199, %v566, 0
      %v573 = vsel %vm213, %v568, 0
      %575 = vmatprep.subr.bf16.mxu0 0
      %576 = vmatpush1.bf16.msra.mxu0 0
      %577 = vmatprep.subr.bf16.mxu0 0
      %578 = vmatpush1.bf16.msra.mxu0 0
      %579 = vmatprep.subr.bf16.mxu0 0
      %580 = vmatpush1.bf16.msra.mxu0 0
      %581 = vmatprep.subr.bf16.mxu0 0
      %582 = vmatpush1.bf16.msra.mxu0 0
      %583 = vmatprep.subr.bf16.mxu0 0
      %584 = vmatpush1.bf16.msra.mxu0 0
      %585 = vmatprep.subr.bf16.mxu0 0
      %586 = vmatpush1.bf16.msra.mxu0 0
      %587 = vmatprep.subr.bf16.mxu0 0
      %588 = vmatpush1.bf16.msra.mxu0 0
      %589 = vmatprep.subr.bf16.mxu0 0
      %590 = vmatpush1.bf16.msra.mxu0 %v573
      %591 = vmatprep.subr.bf16.mxu0 0
      %592 = vmatpush2.bf16.msra.mxu0 0
      %593 = vmatprep.subr.bf16.mxu0 0
      %594 = vmatpush2.bf16.msra.mxu0 0
      %595 = vmatprep.subr.bf16.mxu0 0
      %596 = vmatpush2.bf16.msra.mxu0 0
      %597 = vmatprep.subr.bf16.mxu0 0
      %598 = vmatpush2.bf16.msra.mxu0 0
      %599 = vmatprep.subr.bf16.mxu0 0
      %600 = vmatpush2.bf16.msra.mxu0 0
      %601 = vmatprep.subr.bf16.mxu0 0
      %602 = vmatpush2.bf16.msra.mxu0 0
      %603 = vmatprep.subr.bf16.mxu0 0
      %604 = vmatpush2.bf16.msra.mxu0 0
      %605 = vmatprep.subr.bf16.mxu0 0
      %606 = vmatpush2.bf16.msra.mxu0 0
      %607 = vmatprep.mubr.bf16.mxu0 0
      %608 = vmatmul.mubr.bf16.gmra.mxu0 %v570
      %v609 = vpop.f32.mrf.mxu0
      %v610 = vadd.f32 0.0, %v609
      %v611 = vpop.f32.mrf.mxu0
      %v612 = vpop.f32.mrf.mxu0
      %v613 = vpop.f32.mrf.mxu0
      %614 = vdwg.mxu0
      %v615 = vrcp.pop %v565
      %v616 = vmul.f32 %v610, %v615
      %v617 = vpack.c.bf16 %v616, %v616
      %v619 = vunpack.c.l.b16 %v617
      %v620 = vpack.c.b16 %v619, %v619
      %621 = vrot.lane.b32.xlu0 %v620, 48
      %v622 = vpop.permute.xlu0 %621
      %vm624 = vcmask 519552
      %625 = vst.msk [vmem:[%s134] sm:$0xf] %vm624, %v622
      %p626 = scmp.lt.s32.totalorder %s16, 1
      %s627 = scalar_select %p626, %s16, 1
      %p628 = scmp.lt.s32.totalorder %s17, 0
      %s629 = scalar_select %p628, %s17, 0
      %s630 = sadd.s32 %s629, %s627
      %s631 = smul.addr %s630, 4
      %s632 = scalar_lea.vmem %s1, %s631
      // Predicated region
      $region25: #{transformer_forward.14} parent=23 // pred_check
        %p633 = pneg %p70
      $region26: #{transformer_forward.14} parent=23 // pred_check_branch
        %635 = sbr.rel (%p633) target = $region28
      $region27: #{transformer_forward.14} parent=23 // pred_region
        _
      $region28: #{transformer_forward.14} parent=23 // pred_fallthru
        _
    $region24: #{transformer_forward.14} parent=5 // pred_fallthru
      _
    %p636 = scmp.le.s32.totalorder 2, %s7
    // Predicated region
    $region29: #{transformer_forward.14} parent=5 // pred_check
      %p637 = pneg %p636
    $region30: #{transformer_forward.14} parent=5 // pred_check_branch
      %639 = sbr.rel (%p637) target = $region32
    $region31: #{transformer_forward.14} parent=5 // pred_region
      %s640 = ssub.s32 %s7, 2
      // Predicated region
      $region33: #{transformer_forward.14} parent=31 // pred_check
        %p641 = pneg %p76
      $region34: #{transformer_forward.14} parent=31 // pred_check_branch
        %643 = sbr.rel (%p641) target = $region36
      $region35: #{transformer_forward.14} parent=31 // pred_region
        %p644 = scmp.lt.s32.totalorder %s18, 1
        %s645 = scalar_select %p644, %s18, 1
        %p646 = scmp.lt.s32.totalorder %s19, 0
        %s647 = scalar_select %p646, %s19, 0
        %s648 = sadd.s32 %s647, %s645
        %s649 = smul.addr %s648, 4
        %s650 = scalar_lea.vmem %s1, %s649
      $region36: #{transformer_forward.14} parent=31 // pred_fallthru
        _
    $region32: #{transformer_forward.14} parent=5 // pred_fallthru
      _
  $region6: #{transformer_forward.14} parent=0 // loop_footer
    %s11 = sadd.s32 1, %s7
  $region7: #{transformer_forward.14} parent=0 // loop_footer_branch
    %6 = sbr.rel target = $region3
  $region8: #{transformer_forward.14} parent=0 // loop_exit
    _

// kernel: transformer_forward.17
$region0: #{transformer_forward.17}
  #allocation0 [shape = 'u32[]', space=smem, size = 0x4, offset = 0x4, fixed_abs, tag = 'smem constant byte address 0x4 - core index']
  #allocation1 [shape = 'u32[144,128]{1,0:T(1,128)}', space=vmem, size = 0x12000, scoped, tag = 'internal scratch']
  %s0 = inlined_call_operand.vmem [shape: bf16[16,256], index: 0, kind: input, shape index: {}]
  %s1 = inlined_call_operand.vmem [shape: bf16[256,64], index: 1, kind: input, shape index: {}]
  %s2 = inlined_call_operand.vmem [shape: f32[1,64], index: 2, kind: input, shape index: {}]
  %s3 = inlined_call_operand.vmem [shape: f32[16,64], index: 3, kind: input, shape index: {}]
  %s4 = inlined_call_operand.vmem [shape: f32[16,64], index: 4, kind: input, shape index: {}]
  %s5 = inlined_call_operand.vmem [shape: f32[16,64], index: 5, kind: output, shape index: {}]
  %s6 = sld [smem:[#allocation0]]
  $region30: #{transformer_forward.17} parent=0
    _
  %s8 = ssub.s32 1, %s6
  %s9 = scalar_select 0, %s8, %s6
  // Predicated region
  $region2: #{transformer_forward.17} parent=0 // pred_check
    _
  $region3: #{transformer_forward.17} parent=0 // pred_check_branch
    %11 = sbr.rel (0) target = $region5
  $region4: #{transformer_forward.17} parent=0 // pred_region
    _
  $region5: #{transformer_forward.17} parent=0 // pred_fallthru
    _
  // Predicated region
  $region6: #{transformer_forward.17} parent=0 // pred_check
    _
  $region7: #{transformer_forward.17} parent=0 // pred_check_branch
    %13 = sbr.rel (0) target = $region9
  $region8: #{transformer_forward.17} parent=0 // pred_region
    _
  $region9: #{transformer_forward.17} parent=0 // pred_fallthru
    _
  // Predicated region
  $region10: #{transformer_forward.17} parent=0 // pred_check
    _
  $region11: #{transformer_forward.17} parent=0 // pred_check_branch
    %15 = sbr.rel (0) target = $region13
  $region12: #{transformer_forward.17} parent=0 // pred_region
    _
  $region13: #{transformer_forward.17} parent=0 // pred_fallthru
    _
  // Predicated region
  $region14: #{transformer_forward.17} parent=0 // pred_check
    _
  $region15: #{transformer_forward.17} parent=0 // pred_check_branch
    %17 = sbr.rel (0) target = $region17
  $region16: #{transformer_forward.17} parent=0 // pred_region
    _
  $region17: #{transformer_forward.17} parent=0 // pred_fallthru
    _
  // Predicated region
  $region18: #{transformer_forward.17} parent=0 // pred_check
    _
  $region19: #{transformer_forward.17} parent=0 // pred_check_branch
    %19 = sbr.rel (0) target = $region21
  $region20: #{transformer_forward.17} parent=0 // pred_region
    _
  $region21: #{transformer_forward.17} parent=0 // pred_fallthru
    _
  %v21 = vld [vmem:[%s0] sm:$0xff]
  %v22 = vld [vmem:[%s0 + $0x8] sm:$0xff]
  %v23 = vld [vmem:[%s1] sm:$0xf]
  %v24 = vld [vmem:[%s1 + $0x4] sm:$0xf]
  %v25 = vld [vmem:[%s1 + $0x8] sm:$0xf]
  %v26 = vld [vmem:[%s1 + $0xc] sm:$0xf]
  %v27 = vld [vmem:[%s1 + $0x10] sm:$0xf]
  %v28 = vld [vmem:[%s1 + $0x14] sm:$0xf]
  %v29 = vld [vmem:[%s1 + $0x18] sm:$0xf]
  %v30 = vld [vmem:[%s1 + $0x1c] sm:$0xf]
  %v31 = vld [vmem:[%s1 + $0x20] sm:$0xf]
  %v32 = vld [vmem:[%s1 + $0x24] sm:$0xf]
  %v33 = vld [vmem:[%s1 + $0x28] sm:$0xf]
  %v34 = vld [vmem:[%s1 + $0x2c] sm:$0xf]
  %v35 = vld [vmem:[%s1 + $0x30] sm:$0xf]
  %v36 = vld [vmem:[%s1 + $0x34] sm:$0xf]
  %v37 = vld [vmem:[%s1 + $0x38] sm:$0xf]
  %v38 = vld [vmem:[%s1 + $0x3c] sm:$0xf]
  %v39 = vld [vmem:[%s1 + $0x40] sm:$0xf]
  %v40 = vld [vmem:[%s1 + $0x44] sm:$0xf]
  %v41 = vld [vmem:[%s1 + $0x48] sm:$0xf]
  %v42 = vld [vmem:[%s1 + $0x4c] sm:$0xf]
  %v43 = vld [vmem:[%s1 + $0x50] sm:$0xf]
  %v44 = vld [vmem:[%s1 + $0x54] sm:$0xf]
  %v45 = vld [vmem:[%s1 + $0x58] sm:$0xf]
  %v46 = vld [vmem:[%s1 + $0x5c] sm:$0xf]
  %v47 = vld [vmem:[%s1 + $0x60] sm:$0xf]
  %v48 = vld [vmem:[%s1 + $0x64] sm:$0xf]
  %v49 = vld [vmem:[%s1 + $0x68] sm:$0xf]
  %v50 = vld [vmem:[%s1 + $0x6c] sm:$0xf]
  %v51 = vld [vmem:[%s1 + $0x70] sm:$0xf]
  %v52 = vld [vmem:[%s1 + $0x74] sm:$0xf]
  %v53 = vld [vmem:[%s1 + $0x78] sm:$0xf]
  %v54 = vld [vmem:[%s1 + $0x7c] sm:$0xf]
  %v55 = vld [vmem:[%s2] sm:$0x1]
  %v57 = vlaneseq
  %v58 = vshrl.u32 %v57, 7
  %v59 = vsub.s32 0, %v58
  %v60 = vrot.slane %v55, %v59
  %v64 = vunpack.c.l.b16 %v21
  %v65 = vunpack.c.h.b16 %v21
  %v66 = vunpack.c.l.b16 %v22
  %v67 = vunpack.c.h.b16 %v22
  %v68 = vpack.c.b16 %v66, %v64
  %v69 = vpack.c.b16 %v67, %v65
  %v104 = vunpack.c.l.b16 %v23
  %v105 = vunpack.c.l.b16 %v24
  %v106 = vunpack.c.l.b16 %v25
  %v107 = vunpack.c.l.b16 %v26
  %v108 = vunpack.c.l.b16 %v27
  %v109 = vunpack.c.l.b16 %v28
  %v110 = vunpack.c.l.b16 %v29
  %v111 = vunpack.c.l.b16 %v30
  %v112 = vunpack.c.l.b16 %v31
  %v113 = vunpack.c.l.b16 %v32
  %v114 = vunpack.c.l.b16 %v33
  %v115 = vunpack.c.l.b16 %v34
  %v116 = vunpack.c.l.b16 %v35
  %v117 = vunpack.c.l.b16 %v36
  %v118 = vunpack.c.l.b16 %v37
  %v119 = vunpack.c.l.b16 %v38
  %v120 = vunpack.c.l.b16 %v39
  %v121 = vunpack.c.l.b16 %v40
  %v122 = vunpack.c.l.b16 %v41
  %v123 = vunpack.c.l.b16 %v42
  %v124 = vunpack.c.l.b16 %v43
  %v125 = vunpack.c.l.b16 %v44
  %v126 = vunpack.c.l.b16 %v45
  %v127 = vunpack.c.l.b16 %v46
  %v128 = vunpack.c.l.b16 %v47
  %v129 = vunpack.c.l.b16 %v48
  %v130 = vunpack.c.l.b16 %v49
  %v131 = vunpack.c.l.b16 %v50
  %v132 = vunpack.c.l.b16 %v51
  %v133 = vunpack.c.l.b16 %v52
  %v134 = vunpack.c.l.b16 %v53
  %v135 = vunpack.c.l.b16 %v54
  %v136 = vpack.c.b16 %v105, %v104
  %v137 = vpack.c.b16 %v107, %v106
  %v138 = vpack.c.b16 %v109, %v108
  %v139 = vpack.c.b16 %v111, %v110
  %v140 = vpack.c.b16 %v113, %v112
  %v141 = vpack.c.b16 %v115, %v114
  %v142 = vpack.c.b16 %v117, %v116
  %v143 = vpack.c.b16 %v119, %v118
  %v144 = vpack.c.b16 %v121, %v120
  %v145 = vpack.c.b16 %v123, %v122
  %v146 = vpack.c.b16 %v125, %v124
  %v147 = vpack.c.b16 %v127, %v126
  %v148 = vpack.c.b16 %v129, %v128
  %v149 = vpack.c.b16 %v131, %v130
  %v150 = vpack.c.b16 %v133, %v132
  %v151 = vpack.c.b16 %v135, %v134
  %168 = vmatprep.subr.bf16.mxu0 0
  %169 = vmatpush1.bf16.msra.mxu0 %v143
  %170 = vmatprep.subr.bf16.mxu0 0
  %171 = vmatpush1.bf16.msra.mxu0 %v142
  %172 = vmatprep.subr.bf16.mxu0 0
  %173 = vmatpush1.bf16.msra.mxu0 %v141
  %174 = vmatprep.subr.bf16.mxu0 0
  %175 = vmatpush1.bf16.msra.mxu0 %v140
  %176 = vmatprep.subr.bf16.mxu0 0
  %177 = vmatpush1.bf16.msra.mxu0 %v139
  %178 = vmatprep.subr.bf16.mxu0 0
  %179 = vmatpush1.bf16.msra.mxu0 %v138
  %180 = vmatprep.subr.bf16.mxu0 0
  %181 = vmatpush1.bf16.msra.mxu0 %v137
  %182 = vmatprep.subr.bf16.mxu0 0
  %183 = vmatpush1.bf16.msra.mxu0 %v136
  %184 = vmatprep.subr.bf16.mxu0 0
  %185 = vmatpush2.bf16.msra.mxu0 %v151
  %186 = vmatprep.subr.bf16.mxu0 0
  %187 = vmatpush2.bf16.msra.mxu0 %v150
  %188 = vmatprep.subr.bf16.mxu0 0
  %189 = vmatpush2.bf16.msra.mxu0 %v149
  %190 = vmatprep.subr.bf16.mxu0 0
  %191 = vmatpush2.bf16.msra.mxu0 %v148
  %192 = vmatprep.subr.bf16.mxu0 0
  %193 = vmatpush2.bf16.msra.mxu0 %v147
  %194 = vmatprep.subr.bf16.mxu0 0
  %195 = vmatpush2.bf16.msra.mxu0 %v146
  %196 = vmatprep.subr.bf16.mxu0 0
  %197 = vmatpush2.bf16.msra.mxu0 %v145
  %198 = vmatprep.subr.bf16.mxu0 0
  %199 = vmatpush2.bf16.msra.mxu0 %v144
  %200 = vmatprep.mubr.bf16.mxu0 %v69
  %201 = vmatmul.mubr.bf16.gmra.mxu0 %v68
  %v202 = vpop.f32.mrf.mxu0
  %v203 = vadd.f32 %v60, %v202
  %v204 = vpop.f32.mrf.mxu0
  %v205 = vpop.f32.mrf.mxu0
  %v206 = vadd.f32 %v60, %v205
  %v207 = vpop.f32.mrf.mxu0
  %208 = vdwg.mxu0
  %v209 = vld [vmem:[%s3] sm:$0xff]
  %v210 = vld [vmem:[%s3 + $0x8] sm:$0xff]
  %v211 = vadd.f32 %v203, %v209
  %v212 = vadd.f32 %v206, %v210
  %v213 = vld [vmem:[%s4] sm:$0xff]
  %v214 = vld [vmem:[%s4 + $0x8] sm:$0xff]
  %v215 = vadd.f32 %v211, %v213
  %v216 = vadd.f32 %v212, %v214
  %vm217 = vcmask 523264
  %218 = vst.msk [vmem:[%s5] sm:$0xff] %vm217, %v215
  %219 = vst.msk [vmem:[%s5 + $0x8] sm:$0xff] %vm217, %v216
  // Predicated region
  $region22: #{transformer_forward.17} parent=0 // pred_check
    _
  $region23: #{transformer_forward.17} parent=0 // pred_check_branch
    %221 = sbr.rel (0) target = $region25
  $region24: #{transformer_forward.17} parent=0 // pred_region
    _
  $region25: #{transformer_forward.17} parent=0 // pred_fallthru
    _
  // Predicated region
  $region26: #{transformer_forward.17} parent=0 // pred_check
    _
  $region27: #{transformer_forward.17} parent=0 // pred_check_branch
    %223 = sbr.rel (0) target = $region29
  $region28: #{transformer_forward.17} parent=0 // pred_region
    _
  $region29: #{transformer_forward.17} parent=0 // pred_fallthru
    _

// kernel: transformer_forward.16
$region0: #{transformer_forward.16}
  #allocation0 [shape = 'u32[]', space=smem, size = 0x4, offset = 0x4, fixed_abs, tag = 'smem constant byte address 0x4 - core index']
  #allocation1 [shape = 'u32[144,128]{1,0:T(1,128)}', space=vmem, size = 0x12000, scoped, tag = 'internal scratch']
  #allocation2 [shape = 'bf16[16,64]{1,0:T(8,128)(2,1)}', space=vmem, size = 0x1000, scoped, tag = 'scratch operand']
  %s0 = inlined_call_operand.vmem [shape: f32[16,64], index: 0, kind: input, shape index: {}]
  %s1 = inlined_call_operand.vmem [shape: f32[1,64], index: 1, kind: input, shape index: {}]
  %s2 = inlined_call_operand.vmem [shape: f32[1,64], index: 2, kind: input, shape index: {}]
  %s3 = inlined_call_operand.vmem [shape: bf16[64,256], index: 3, kind: input, shape index: {}]
  %s4 = inlined_call_operand.vmem [shape: f32[1,256], index: 4, kind: input, shape index: {}]
  %s5 = inlined_call_operand.vmem [shape: bf16[16,256], index: 5, kind: output, shape index: {}]
  %s6 = sld [smem:[#allocation0]]
  $region34: #{transformer_forward.16} parent=0
    _
  %s8 = ssub.s32 1, %s6
  %s9 = scalar_select 0, %s8, %s6
  // Predicated region
  $region2: #{transformer_forward.16} parent=0 // pred_check
    _
  $region3: #{transformer_forward.16} parent=0 // pred_check_branch
    %11 = sbr.rel (0) target = $region5
  $region4: #{transformer_forward.16} parent=0 // pred_region
    _
  $region5: #{transformer_forward.16} parent=0 // pred_fallthru
    _
  // Predicated region
  $region6: #{transformer_forward.16} parent=0 // pred_check
    _
  $region7: #{transformer_forward.16} parent=0 // pred_check_branch
    %13 = sbr.rel (0) target = $region9
  $region8: #{transformer_forward.16} parent=0 // pred_region
    _
  $region9: #{transformer_forward.16} parent=0 // pred_fallthru
    _
  // Predicated region
  $region10: #{transformer_forward.16} parent=0 // pred_check
    _
  $region11: #{transformer_forward.16} parent=0 // pred_check_branch
    %15 = sbr.rel (0) target = $region13
  $region12: #{transformer_forward.16} parent=0 // pred_region
    _
  $region13: #{transformer_forward.16} parent=0 // pred_fallthru
    _
  // Predicated region
  $region14: #{transformer_forward.16} parent=0 // pred_check
    _
  $region15: #{transformer_forward.16} parent=0 // pred_check_branch
    %17 = sbr.rel (0) target = $region17
  $region16: #{transformer_forward.16} parent=0 // pred_region
    _
  $region17: #{transformer_forward.16} parent=0 // pred_fallthru
    _
  // Predicated region
  $region18: #{transformer_forward.16} parent=0 // pred_check
    _
  $region19: #{transformer_forward.16} parent=0 // pred_check_branch
    %19 = sbr.rel (0) target = $region21
  $region20: #{transformer_forward.16} parent=0 // pred_region
    _
  $region21: #{transformer_forward.16} parent=0 // pred_fallthru
    _
  %p21 = scmp.eq.s32.totalorder 0, 0
  // Predicated region
  $region22: #{transformer_forward.16} parent=0 // pred_check
    %p22 = pneg %p21
  $region23: #{transformer_forward.16} parent=0 // pred_check_branch
    %24 = sbr.rel (%p22) target = $region25
  $region24: #{transformer_forward.16} parent=0 // pred_region
    %v25 = vld [vmem:[%s0] sm:$0xff]
    %v26 = vld [vmem:[%s0 + $0x8] sm:$0xff]
    %vm27 = vcmask 523264
    %v28 = vsel %vm27, %v25, 0.0
    %29 = vadd.xlane.f32.xlu0 %v28
    %v30 = vpop.xlane.xlu0 %29
    %v31 = vsel %vm27, %v26, 0.0
    %32 = vadd.xlane.f32.xlu0 %v31
    %v33 = vpop.xlane.xlu0 %32
    %v34 = vrcp.pop 64.0
    %v35 = vmul.f32 %v30, %v34
    %v36 = vmul.f32 %v33, %v34
    %v37 = vsub.f32 %v25, %v35
    %v38 = vsub.f32 %v26, %v36
    %v39 = vmul.f32 %v37, %v37
    %v40 = vmul.f32 %v38, %v38
    %v41 = vsel %vm27, %v39, 0.0
    %42 = vadd.xlane.f32.xlu0 %v41
    %v43 = vpop.xlane.xlu0 %42
    %v44 = vsel %vm27, %v40, 0.0
    %45 = vadd.xlane.f32.xlu0 %v44
    %v46 = vpop.xlane.xlu0 %45
    %v47 = vmul.f32 %v43, %v34
    %v48 = vmul.f32 %v46, %v34
    %v49 = vadd.f32 %v47, 1e-05
    %v50 = vadd.f32 %v48, 1e-05
    %v51 = vrsqrt.pop %v49
    %v52 = vrsqrt.pop %v50
    %v53 = vmul.f32 %v37, %v51
    %v54 = vmul.f32 %v38, %v52
    %v55 = vld [vmem:[%s1] sm:$0x1]
    %v57 = vlaneseq
    %v58 = vshrl.u32 %v57, 7
    %v59 = vsub.s32 0, %v58
    %v60 = vrot.slane %v55, %v59
    %v62 = vmul.f32 %v53, %v60
    %v63 = vmul.f32 %v54, %v60
    %v64 = vld [vmem:[%s2] sm:$0x1]
    %v66 = vlaneseq
    %v67 = vshrl.u32 %v66, 7
    %v68 = vsub.s32 0, %v67
    %v69 = vrot.slane %v64, %v68
    %v71 = vadd.f32 %v62, %v69
    %v72 = vadd.f32 %v63, %v69
    %v73 = vpack.c.bf16 %v72, %v71
    %v75 = vunpack.c.l.b16 %v73
    %v76 = vunpack.c.h.b16 %v73
    %v77 = vpack.c.b16 %v75, %v75
    %v78 = vpack.c.b16 %v76, %v76
    %vm81 = vcmask 519168
    %82 = vst.msk [vmem:[#allocation2] sm:$0xf] %vm81, %v77
    %83 = vst.msk [vmem:[#allocation2 + $0x4] sm:$0xf] %vm81, %v78
  $region25: #{transformer_forward.16} parent=0 // pred_fallthru
    _
  %v84 = vld [vmem:[#allocation2] sm:$0xf]
  %v85 = vld [vmem:[#allocation2 + $0x4] sm:$0xf]
  %v86 = vld [vmem:[%s3] sm:$0xff]
  %v87 = vld [vmem:[%s3 + $0x8] sm:$0xff]
  %v88 = vld [vmem:[%s3 + $0x10] sm:$0xff]
  %v89 = vld [vmem:[%s3 + $0x18] sm:$0xff]
  %v90 = vld [vmem:[%s3 + $0x20] sm:$0xff]
  %v91 = vld [vmem:[%s3 + $0x28] sm:$0xff]
  %v92 = vld [vmem:[%s3 + $0x30] sm:$0xff]
  %v93 = vld [vmem:[%s3 + $0x38] sm:$0xff]
  %v94 = vld [vmem:[%s4] sm:$0x3]
  %v96 = vlaneseq
  %v97 = vshrl.u32 %v96, 7
  %v98 = vsub.s32 0, %v97
  %v99 = vrot.slane %v94, %v98
  %v100 = vlaneseq
  %v101 = vshrl.u32 %v100, 7
  %v102 = vsub.s32 1, %v101
  %v103 = vrot.slane %v94, %v102
  %v108 = vunpack.c.l.b16 %v84
  %v109 = vunpack.c.l.b16 %v85
  %v110 = vpack.c.b16 %v109, %v108
  %v119 = vunpack.c.l.b16 %v86
  %v120 = vunpack.c.h.b16 %v86
  %v121 = vunpack.c.l.b16 %v87
  %v122 = vunpack.c.h.b16 %v87
  %v123 = vunpack.c.l.b16 %v88
  %v124 = vunpack.c.h.b16 %v88
  %v125 = vunpack.c.l.b16 %v89
  %v126 = vunpack.c.h.b16 %v89
  %v127 = vunpack.c.l.b16 %v90
  %v128 = vunpack.c.h.b16 %v90
  %v129 = vunpack.c.l.b16 %v91
  %v130 = vunpack.c.h.b16 %v91
  %v131 = vunpack.c.l.b16 %v92
  %v132 = vunpack.c.h.b16 %v92
  %v133 = vunpack.c.l.b16 %v93
  %v134 = vunpack.c.h.b16 %v93
  %v135 = vpack.c.b16 %v121, %v119
  %v136 = vpack.c.b16 %v122, %v120
  %v137 = vpack.c.b16 %v125, %v123
  %v138 = vpack.c.b16 %v126, %v124
  %v139 = vpack.c.b16 %v129, %v127
  %v140 = vpack.c.b16 %v130, %v128
  %v141 = vpack.c.b16 %v133, %v131
  %v142 = vpack.c.b16 %v134, %v132
  %vm151 = vcmask 523264
  %v153 = vsel %vm151, %v110, 0
  %155 = vmatprep.subr.bf16.mxu0 0
  %156 = vmatpush1.bf16.msra.mxu0 0
  %157 = vmatprep.subr.bf16.mxu0 0
  %158 = vmatpush1.bf16.msra.mxu0 0
  %159 = vmatprep.subr.bf16.mxu0 0
  %160 = vmatpush1.bf16.msra.mxu0 0
  %161 = vmatprep.subr.bf16.mxu0 0
  %162 = vmatpush1.bf16.msra.mxu0 0
  %163 = vmatprep.subr.bf16.mxu0 %v142
  %164 = vmatpush1.bf16.msra.mxu0 %v141
  %165 = vmatprep.subr.bf16.mxu0 %v140
  %166 = vmatpush1.bf16.msra.mxu0 %v139
  %167 = vmatprep.subr.bf16.mxu0 %v138
  %168 = vmatpush1.bf16.msra.mxu0 %v137
  %169 = vmatprep.subr.bf16.mxu0 %v136
  %170 = vmatpush1.bf16.msra.mxu0 %v135
  %171 = vmatprep.subr.bf16.mxu0 0
  %172 = vmatpush2.bf16.msra.mxu0 0
  %173 = vmatprep.subr.bf16.mxu0 0
  %174 = vmatpush2.bf16.msra.mxu0 0
  %175 = vmatprep.subr.bf16.mxu0 0
  %176 = vmatpush2.bf16.msra.mxu0 0
  %177 = vmatprep.subr.bf16.mxu0 0
  %178 = vmatpush2.bf16.msra.mxu0 0
  %179 = vmatprep.subr.bf16.mxu0 0
  %180 = vmatpush2.bf16.msra.mxu0 0
  %181 = vmatprep.subr.bf16.mxu0 0
  %182 = vmatpush2.bf16.msra.mxu0 0
  %183 = vmatprep.subr.bf16.mxu0 0
  %184 = vmatpush2.bf16.msra.mxu0 0
  %185 = vmatprep.subr.bf16.mxu0 0
  %186 = vmatpush2.bf16.msra.mxu0 0
  %187 = vmatprep.mubr.bf16.mxu0 0
  %188 = vmatmul.mubr.bf16.gmra.mxu0 %v153
  %v189 = vpop.f32.mrf.mxu0
  %v190 = vadd.f32 %v99, %v189
  %v191 = vpop.f32.mrf.mxu0
  %v192 = vadd.f32 %v103, %v191
  %v193 = vpop.f32.mrf.mxu0
  %v194 = vadd.f32 %v99, %v193
  %v195 = vpop.f32.mrf.mxu0
  %v196 = vadd.f32 %v103, %v195
  %197 = vdwg.mxu0
  %v198 = vmul.f32 %v190, 0.5
  %v199 = vmul.f32 %v192, 0.5
  %v200 = vmul.f32 %v194, 0.5
  %v201 = vmul.f32 %v196, 0.5
  %v202 = vmul.f32 %v190, 0.70710677
  %v203 = vmul.f32 %v192, 0.70710677
  %v204 = vmul.f32 %v194, 0.70710677
  %v205 = vmul.f32 %v196, 0.70710677
  %v206 = verf.f32.pop %v202
  %v207 = verf.f32.pop %v203
  %v208 = verf.f32.pop %v204
  %v209 = verf.f32.pop %v205
  %v210 = vadd.f32 %v206, 1.0
  %v211 = vadd.f32 %v207, 1.0
  %v212 = vadd.f32 %v208, 1.0
  %v213 = vadd.f32 %v209, 1.0
  %v214 = vmul.f32 %v198, %v210
  %v215 = vmul.f32 %v199, %v211
  %v216 = vmul.f32 %v200, %v212
  %v217 = vmul.f32 %v201, %v213
  %v218 = vpack.c.bf16 %v216, %v214
  %v219 = vpack.c.bf16 %v217, %v215
  %v222 = vunpack.c.l.b16 %v218
  %v223 = vunpack.c.l.b16 %v219
  %v224 = vunpack.c.h.b16 %v218
  %v225 = vunpack.c.h.b16 %v219
  %v226 = vpack.c.b16 %v223, %v222
  %v227 = vpack.c.b16 %v225, %v224
  %230 = vst [vmem:[%s5] sm:$0xff] %v226
  %231 = vst [vmem:[%s5 + $0x8] sm:$0xff] %v227
  // Predicated region
  $region26: #{transformer_forward.16} parent=0 // pred_check
    _
  $region27: #{transformer_forward.16} parent=0 // pred_check_branch
    %233 = sbr.rel (0) target = $region29
  $region28: #{transformer_forward.16} parent=0 // pred_region
    _
  $region29: #{transformer_forward.16} parent=0 // pred_fallthru
    _
  // Predicated region
  $region30: #{transformer_forward.16} parent=0 // pred_check
    _
  $region31: #{transformer_forward.16} parent=0 // pred_check_branch
    %235 = sbr.rel (0) target = $region33
  $region32: #{transformer_forward.16} parent=0 // pred_region
    _
  $region33: #{transformer_forward.16} parent=0 // pred_fallthru
    _

// kernel: transformer_forward.23
$region0: #{transformer_forward.23}
  #allocation0 [shape = 'u32[]', space=smem, size = 0x4, offset = 0x4, fixed_abs, tag = 'smem constant byte address 0x4 - core index']
  #allocation1 [shape = 'u32[144,128]{1,0:T(1,128)}', space=vmem, size = 0x12000, scoped, tag = 'internal scratch']
  #allocation2 [shape = 'bf16[16,64]{1,0:T(8,128)(2,1)}', space=vmem, size = 0x1000, scoped, tag = 'scratch operand']
  %s0 = inlined_call_operand.vmem [shape: f32[16,64], index: 0, kind: input, shape index: {}]
  %s1 = inlined_call_operand.vmem [shape: f32[1,64], index: 1, kind: input, shape index: {}]
  %s2 = inlined_call_operand.vmem [shape: f32[1,64], index: 2, kind: input, shape index: {}]
  %s3 = inlined_call_operand.vmem [shape: bf16[64,256], index: 3, kind: input, shape index: {}]
  %s4 = inlined_call_operand.hbm [shape: f32[16,256], index: 4, kind: output, shape index: {}]
  %s5 = sld [smem:[#allocation0]]
  $region30: #{transformer_forward.23} parent=0
    _
  %s7 = ssub.s32 1, %s5
  %s8 = scalar_select 0, %s7, %s5
  $region1: #{transformer_forward.23} parent=0
    #allocation3 [shape = 'u8[16384]{0}', space=vmem, size = 0x4000, scoped, tag = 'output window, operand 0, single buffered']
    #allocation4 [shape = 's32[1]{0}', space=sflag, size = 0x4, scoped, tag = 'scoped memory for transformer_forward.23']
    %9 = vsyncpa [#allocation4], 0
    // Predicated region
    $region2: #{transformer_forward.23} parent=1 // pred_check
      _
    $region3: #{transformer_forward.23} parent=1 // pred_check_branch
      %11 = sbr.rel (0) target = $region5
    $region4: #{transformer_forward.23} parent=1 // pred_region
      _
    $region5: #{transformer_forward.23} parent=1 // pred_fallthru
      _
    // Predicated region
    $region6: #{transformer_forward.23} parent=1 // pred_check
      _
    $region7: #{transformer_forward.23} parent=1 // pred_check_branch
      %13 = sbr.rel (0) target = $region9
    $region8: #{transformer_forward.23} parent=1 // pred_region
      _
    $region9: #{transformer_forward.23} parent=1 // pred_fallthru
      _
    // Predicated region
    $region10: #{transformer_forward.23} parent=1 // pred_check
      _
    $region11: #{transformer_forward.23} parent=1 // pred_check_branch
      %15 = sbr.rel (0) target = $region13
    $region12: #{transformer_forward.23} parent=1 // pred_region
      _
    $region13: #{transformer_forward.23} parent=1 // pred_fallthru
      _
    // Predicated region
    $region14: #{transformer_forward.23} parent=1 // pred_check
      _
    $region15: #{transformer_forward.23} parent=1 // pred_check_branch
      %17 = sbr.rel (0) target = $region17
    $region16: #{transformer_forward.23} parent=1 // pred_region
      _
    $region17: #{transformer_forward.23} parent=1 // pred_fallthru
      _
    %p19 = scmp.eq.s32.totalorder 0, 0
    // Predicated region
    $region18: #{transformer_forward.23} parent=1 // pred_check
      %p20 = pneg %p19
    $region19: #{transformer_forward.23} parent=1 // pred_check_branch
      %22 = sbr.rel (%p20) target = $region21
    $region20: #{transformer_forward.23} parent=1 // pred_region
      %v23 = vld [vmem:[%s0] sm:$0xff]
      %v24 = vld [vmem:[%s0 + $0x8] sm:$0xff]
      %vm25 = vcmask 523264
      %v26 = vsel %vm25, %v23, 0.0
      %27 = vadd.xlane.f32.xlu0 %v26
      %v28 = vpop.xlane.xlu0 %27
      %v29 = vsel %vm25, %v24, 0.0
      %30 = vadd.xlane.f32.xlu0 %v29
      %v31 = vpop.xlane.xlu0 %30
      %v32 = vrcp.pop 64.0
      %v33 = vmul.f32 %v28, %v32
      %v34 = vmul.f32 %v31, %v32
      %v35 = vsub.f32 %v23, %v33
      %v36 = vsub.f32 %v24, %v34
      %v37 = vmul.f32 %v35, %v35
      %v38 = vmul.f32 %v36, %v36
      %v39 = vsel %vm25, %v37, 0.0
      %40 = vadd.xlane.f32.xlu0 %v39
      %v41 = vpop.xlane.xlu0 %40
      %v42 = vsel %vm25, %v38, 0.0
      %43 = vadd.xlane.f32.xlu0 %v42
      %v44 = vpop.xlane.xlu0 %43
      %v45 = vmul.f32 %v41, %v32
      %v46 = vmul.f32 %v44, %v32
      %v47 = vadd.f32 %v45, 1e-05
      %v48 = vadd.f32 %v46, 1e-05
      %v49 = vrsqrt.pop %v47
      %v50 = vrsqrt.pop %v48
      %v51 = vmul.f32 %v35, %v49
      %v52 = vmul.f32 %v36, %v50
      %v53 = vld [vmem:[%s1] sm:$0x1]
      %v55 = vlaneseq
      %v56 = vshrl.u32 %v55, 7
      %v57 = vsub.s32 0, %v56
      %v58 = vrot.slane %v53, %v57
      %v60 = vmul.f32 %v51, %v58
      %v61 = vmul.f32 %v52, %v58
      %v62 = vld [vmem:[%s2] sm:$0x1]
      %v64 = vlaneseq
      %v65 = vshrl.u32 %v64, 7
      %v66 = vsub.s32 0, %v65
      %v67 = vrot.slane %v62, %v66
      %v69 = vadd.f32 %v60, %v67
      %v70 = vadd.f32 %v61, %v67
      %v71 = vpack.c.bf16 %v70, %v69
      %v73 = vunpack.c.l.b16 %v71
      %v74 = vunpack.c.h.b16 %v71
      %v75 = vpack.c.b16 %v73, %v73
      %v76 = vpack.c.b16 %v74, %v74
      %vm79 = vcmask 519168
      %80 = vst.msk [vmem:[#allocation2] sm:$0xf] %vm79, %v75
      %81 = vst.msk [vmem:[#allocation2 + $0x4] sm:$0xf] %vm79, %v76
    $region21: #{transformer_forward.23} parent=1 // pred_fallthru
      _
    %v82 = vld [vmem:[#allocation2] sm:$0xf]
    %v83 = vld [vmem:[#allocation2 + $0x4] sm:$0xf]
    %v84 = vld [vmem:[%s3] sm:$0xff]
    %v85 = vld [vmem:[%s3 + $0x8] sm:$0xff]
    %v86 = vld [vmem:[%s3 + $0x10] sm:$0xff]
    %v87 = vld [vmem:[%s3 + $0x18] sm:$0xff]
    %v88 = vld [vmem:[%s3 + $0x20] sm:$0xff]
    %v89 = vld [vmem:[%s3 + $0x28] sm:$0xff]
    %v90 = vld [vmem:[%s3 + $0x30] sm:$0xff]
    %v91 = vld [vmem:[%s3 + $0x38] sm:$0xff]
    %v94 = vunpack.c.l.b16 %v82
    %v95 = vunpack.c.l.b16 %v83
    %v96 = vpack.c.b16 %v95, %v94
    %v105 = vunpack.c.l.b16 %v84
    %v106 = vunpack.c.h.b16 %v84
    %v107 = vunpack.c.l.b16 %v85
    %v108 = vunpack.c.h.b16 %v85
    %v109 = vunpack.c.l.b16 %v86
    %v110 = vunpack.c.h.b16 %v86
    %v111 = vunpack.c.l.b16 %v87
    %v112 = vunpack.c.h.b16 %v87
    %v113 = vunpack.c.l.b16 %v88
    %v114 = vunpack.c.h.b16 %v88
    %v115 = vunpack.c.l.b16 %v89
    %v116 = vunpack.c.h.b16 %v89
    %v117 = vunpack.c.l.b16 %v90
    %v118 = vunpack.c.h.b16 %v90
    %v119 = vunpack.c.l.b16 %v91
    %v120 = vunpack.c.h.b16 %v91
    %v121 = vpack.c.b16 %v107, %v105
    %v122 = vpack.c.b16 %v108, %v106
    %v123 = vpack.c.b16 %v111, %v109
    %v124 = vpack.c.b16 %v112, %v110
    %v125 = vpack.c.b16 %v115, %v113
    %v126 = vpack.c.b16 %v116, %v114
    %v127 = vpack.c.b16 %v119, %v117
    %v128 = vpack.c.b16 %v120, %v118
    %vm137 = vcmask 523264
    %v139 = vsel %vm137, %v96, 0
    %141 = vmatprep.subr.bf16.mxu0 0
    %142 = vmatpush1.bf16.msra.mxu0 0
    %143 = vmatprep.subr.bf16.mxu0 0
    %144 = vmatpush1.bf16.msra.mxu0 0
    %145 = vmatprep.subr.bf16.mxu0 0
    %146 = vmatpush1.bf16.msra.mxu0 0
    %147 = vmatprep.subr.bf16.mxu0 0
    %148 = vmatpush1.bf16.msra.mxu0 0
    %149 = vmatprep.subr.bf16.mxu0 %v128
    %150 = vmatpush1.bf16.msra.mxu0 %v127
    %151 = vmatprep.subr.bf16.mxu0 %v126
    %152 = vmatpush1.bf16.msra.mxu0 %v125
    %153 = vmatprep.subr.bf16.mxu0 %v124
    %154 = vmatpush1.bf16.msra.mxu0 %v123
    %155 = vmatprep.subr.bf16.mxu0 %v122
    %156 = vmatpush1.bf16.msra.mxu0 %v121
    %157 = vmatprep.subr.bf16.mxu0 0
    %158 = vmatpush2.bf16.msra.mxu0 0
    %159 = vmatprep.subr.bf16.mxu0 0
    %160 = vmatpush2.bf16.msra.mxu0 0
    %161 = vmatprep.subr.bf16.mxu0 0
    %162 = vmatpush2.bf16.msra.mxu0 0
    %163 = vmatprep.subr.bf16.mxu0 0
    %164 = vmatpush2.bf16.msra.mxu0 0
    %165 = vmatprep.subr.bf16.mxu0 0
    %166 = vmatpush2.bf16.msra.mxu0 0
    %167 = vmatprep.subr.bf16.mxu0 0
    %168 = vmatpush2.bf16.msra.mxu0 0
    %169 = vmatprep.subr.bf16.mxu0 0
    %170 = vmatpush2.bf16.msra.mxu0 0
    %171 = vmatprep.subr.bf16.mxu0 0
    %172 = vmatpush2.bf16.msra.mxu0 0
    %173 = vmatprep.mubr.bf16.mxu0 0
    %174 = vmatmul.mubr.bf16.gmra.mxu0 %v139
    %v175 = vpop.f32.mrf.mxu0
    %v176 = vadd.f32 0.0, %v175
    %v177 = vpop.f32.mrf.mxu0
    %v178 = vadd.f32 0.0, %v177
    %v179 = vpop.f32.mrf.mxu0
    %v180 = vadd.f32 0.0, %v179
    %v181 = vpop.f32.mrf.mxu0
    %v182 = vadd.f32 0.0, %v181
    %183 = vdwg.mxu0
    %184 = vst [vmem:[#allocation3] sm:$0xff] %v176
    %185 = vst [vmem:[#allocation3 + $0x8] sm:$0xff] %v178
    %186 = vst [vmem:[#allocation3 + $0x10] sm:$0xff] %v180
    %187 = vst [vmem:[#allocation3 + $0x18] sm:$0xff] %v182
    // Predicated region
    $region22: #{transformer_forward.23} parent=1 // pred_check
      _
    $region23: #{transformer_forward.23} parent=1 // pred_check_branch
      %189 = sbr.rel (0) target = $region25
    $region24: #{transformer_forward.23} parent=1 // pred_region
      %s191 = ssub.s32 512, 512
      %192 = vsyncadd [#allocation4], %s191
      %s193 = sshll.u32 [#allocation3], 4
      %s194 = int_to_ptr.vmem [resolvable:$true] %s193
      %199 = dma.vmem_to_hbm [thread:$0]  %s194, 512, %s4, [#allocation4], 256, 256, 16
    $region25: #{transformer_forward.23} parent=1 // pred_fallthru
      _
    // Predicated region
    $region26: #{transformer_forward.23} parent=1 // pred_check
      _
    $region27: #{transformer_forward.23} parent=1 // pred_check_branch
      %201 = sbr.rel (0) target = $region29
    $region28: #{transformer_forward.23} parent=1 // pred_region
      %202 = dma.done [#allocation4], 512
    $region29: #{transformer_forward.23} parent=1 // pred_fallthru
      _
    %203 = vsyncpa [#allocation4], 1

</llo_original>
